<compile_context>
chip_gen: v7x
topology: tpu7x:2x2x1
jax: 0.10.0
libtpu: 0.0.40
codegen_flags: <defaults>
</compile_context>

<pallas_src>
import functools

import numpy as np
import jax
import jax.numpy as jnp
from jax.experimental import pallas as pl
from jax.experimental.pallas import tpu as pltpu


def _vk_accum_kernel(x_ref, wkv_ref, mask_ref, vk_ref, ksum_ref, *,
                     n_groups, gd):
    """Pass 1: accumulate grouped k^T v and per-channel k column sums.

    grid = (B, n_seq_tiles); the sequence-tile axis (last) is the reduction
    axis — vk_ref / ksum_ref block indices are constant along it, so the fp32
    accumulators stay VMEM-resident.  All head groups handled in one step so
    the x tile is streamed from HBM exactly once.
    """
    t = pl.program_id(1)
    c = n_groups * gd

    @pl.when(t == 0)
    def _init():
        vk_ref[...] = jnp.zeros_like(vk_ref)
        ksum_ref[...] = jnp.zeros_like(ksum_ref)

    # relu(x @ [Wk | Wv]) — one lane-dense (tn, 2C) MXU matmul per tile.
    xv = x_ref[...].astype(wkv_ref.dtype)
    kv = jnp.dot(xv, wkv_ref[...], preferred_element_type=jnp.float32)
    kv = jnp.maximum(kv, 0.0)
    k = kv[:, :c]                                    # (tn, C)
    v = kv[:, c:]                                    # (tn, C)

    # Denominator ingredient: per-channel column sums of k.  Replaces the old
    # 132-wide [v ; 1] matmul + per-step concat — keeps every MXU matmul an
    # exact multiple of 128 output lanes (matters on v5e's 128-wide MXU).
    ksum_ref[...] += jnp.sum(k, axis=0, keepdims=True)

    # Per head group g: M_g = k_g^T @ v_g (fp32 accumulate).  Only the DxD
    # diagonal blocks are meaningful; cross-head blocks are zeroed once below.
    for g in range(n_groups):
        kg = k[:, g * gd:(g + 1) * gd]
        vg = v[:, g * gd:(g + 1) * gd]
        vk_ref[g, :, :] = vk_ref[g, :, :] + jax.lax.dot_general(
            kg, vg, (((0,), (0,)), ((), ())),
            preferred_element_type=jnp.float32)

    # Fold the block-diagonal mask into the last reduction step: no separate
    # XLA kernel / HBM round trip of vk between the two pallas_calls.
    @pl.when(t == pl.num_programs(1) - 1)
    def _finalize():
        for g in range(n_groups):
            vk_ref[g, :, :] = vk_ref[g, :, :] * mask_ref[...]


def _apply_proj_kernel(x_ref, wq_ref, vk_ref, ksum_ref, col_ref, exp_ref,
                       wp_ref, b_ref, y_ref, *, n_groups, gd, eps):
    """Pass 2: q = relu(x @ Wq), per-group q_g @ M_g, divide, projection.

    grid = (B, n_seq_tiles), both axes "parallel" (no reduction axis: the
    head-group loop is fused in-kernel and Wq / Wproj are VMEM-resident).
    """
    q = jnp.dot(x_ref[...].astype(wq_ref.dtype), wq_ref[...],
                preferred_element_type=jnp.float32)
    q = jnp.maximum(q, 0.0)                          # (tn, C) fp32

    # Numerators: per group one lane-dense (tn, GD) @ (GD, GD) MXU matmul
    # against the (masked, block-diagonal) grouped vk.
    nums = [jnp.dot(q[:, g * gd:(g + 1) * gd], vk_ref[g],
                    preferred_element_type=jnp.float32)
            for g in range(n_groups)]
    num = jnp.concatenate(nums, axis=-1)             # (tn, C), lane-aligned

    # Denominator: den[n, h] = sum_d q[n, h, d] * ksum[h, d].
    dprod = q * ksum_ref[...]                        # (tn, C), VPU
    den = jnp.dot(dprod, col_ref[...],               # (tn, H) collapse
                  preferred_element_type=jnp.float32)
    rden = pl.reciprocal(den + eps, approx=False)    # EUP slot, exact
    rden_b = jnp.dot(rden, exp_ref[...],             # broadcast back to (tn, C)
                     preferred_element_type=jnp.float32)

    # Matches PyTorch's cast of proj_input to x.dtype (wp dtype == x dtype
    # unless the bf16 weight flag is used).
    proj_in = (num * rden_b).astype(wp_ref.dtype)
    y = jnp.dot(proj_in, wp_ref[...], preferred_element_type=jnp.float32)
    y_ref[...] = (y + b_ref[...]).astype(y_ref.dtype)


def lite_mla_fwd(x, qkv_weight, proj_weight, proj_bias, num_heads,
                 eps=1e-15, seq_tile=512, weight_dtype=None):
    B, N, C = x.shape
    assert C % num_heads == 0
    D = C // num_heads

    # Group heads so each group's matmul output width is (ideally) 128 lanes.
    G = min(num_heads, max(1, 128 // D))
    while num_heads % G:
        G -= 1
    n_groups = num_heads // G
    GD = G * D
    # TODO(synk): if D does not divide 128 (e.g. D=96) the GD-wide lane slices
    # are not vreg-aligned and force relayouts; pad D in the weight prep.

    sub = 8 if x.dtype.itemsize == 4 else 16          # dtype-aware sublane min
    tn = min(seq_tile, N)
    if N % tn or tn % sub:
        tn = N  # TODO(synk): ragged N needs a cdiv grid + tail masking.
    n_tiles = N // tn

    # --- weight prep: pre-transposed slabs, fetched once (constant index) ---
    # Optional bf16 cast halves resident weight VMEM + HBM traffic (v7x's
    # 64 MiB budget); small parity deviation from the fp32 PyTorch path.
    wdt = weight_dtype if weight_dtype is not None else x.dtype
    wq = qkv_weight[0 * C:1 * C].T.astype(wdt)                     # (C, C)
    wk = qkv_weight[1 * C:2 * C].T
    wv = qkv_weight[2 * C:3 * C].T
    wkv = jnp.concatenate([wk, wv], axis=-1).astype(wdt)           # (C, 2C)
    wp = proj_weight.T.astype(wdt)                                 # (C, C)
    bias2 = proj_bias.reshape(1, C).astype(jnp.float32)

    # Small constant matrices, built once on the host.
    rh = np.arange(GD) // D
    mask = jnp.asarray((rh[:, None] == rh[None, :]).astype(np.float32))  # (GD,GD)
    hc = np.arange(C) // D
    collapse = jnp.asarray(
        (hc[:, None] == np.arange(num_heads)[None, :]).astype(np.float32))  # (C,H)
    expand = jnp.asarray(
        (np.arange(num_heads)[:, None] == hc[None, :]).astype(np.float32))  # (H,C)

    vmem_cap = 48 * 1024 * 1024   # explicit scoped-VMEM budget (safe on v5e..v7x)

    # ------ pass 1: vk / ksum accumulation over N tiles (groups fused) ------
    vk, ksum = pl.pallas_call(
        functools.partial(_vk_accum_kernel, n_groups=n_groups, gd=GD),
        out_shape=(jax.ShapeDtypeStruct((B, n_groups, GD, GD), jnp.float32),
                   jax.ShapeDtypeStruct((B, 1, C), jnp.float32)),
        grid=(B, n_tiles),
        in_specs=[
            pl.BlockSpec((None, tn, C), lambda b, t: (b, t, 0)),        # x
            pl.BlockSpec((C, 2 * C), lambda b, t: (0, 0)),              # Wkv
            pl.BlockSpec((GD, GD), lambda b, t: (0, 0)),                # mask
        ],
        out_specs=[
            pl.BlockSpec((None, n_groups, GD, GD), lambda b, t: (b, 0, 0, 0)),
            pl.BlockSpec((None, 1, C), lambda b, t: (b, 0, 0)),
        ],
        compiler_params=pltpu.CompilerParams(
            dimension_semantics=("parallel", "arbitrary"),
            vmem_limit_bytes=vmem_cap),
    )(x, wkv, mask)

    # ---- pass 2: q, q@vk, divide, output projection (groups fused, no -----
    # ---- reduction axis; Wq / Wproj stay VMEM-resident) -------------------
    y = pl.pallas_call(
        functools.partial(_apply_proj_kernel, n_groups=n_groups, gd=GD, eps=eps),
        out_shape=jax.ShapeDtypeStruct((B, N, C), x.dtype),
        grid=(B, n_tiles),
        in_specs=[
            pl.BlockSpec((None, tn, C), lambda b, t: (b, t, 0)),        # x
            pl.BlockSpec((C, C), lambda b, t: (0, 0)),                  # Wq
            pl.BlockSpec((None, n_groups, GD, GD),
                         lambda b, t: (b, 0, 0, 0)),                    # vk
            pl.BlockSpec((None, 1, C), lambda b, t: (b, 0, 0)),         # ksum
            pl.BlockSpec((C, num_heads), lambda b, t: (0, 0)),          # collapse
            pl.BlockSpec((num_heads, C), lambda b, t: (0, 0)),          # expand
            pl.BlockSpec((C, C), lambda b, t: (0, 0)),                  # Wproj
            pl.BlockSpec((1, C), lambda b, t: (0, 0)),                  # bias
        ],
        out_specs=pl.BlockSpec((None, tn, C), lambda b, t: (b, t, 0)),
        compiler_params=pltpu.CompilerParams(
            dimension_semantics=("parallel", "parallel"),
            vmem_limit_bytes=vmem_cap),
    )(x, wq, vk, ksum, collapse, expand, wp, bias2)
    return y


def lite_mla_reference(x, qkv_weight, proj_weight, proj_bias, num_heads, eps):
    """Pure-JAX mirror of the PyTorch forward (HIGHEST precision matmuls)."""
    hp = jax.lax.Precision.HIGHEST
    B, N, C = x.shape
    D = C // num_heads
    qkv = jnp.maximum(jnp.dot(x, qkv_weight.T, precision=hp), 0.0)
    q, k, v = qkv[..., :C], qkv[..., C:2 * C], qkv[..., 2 * C:]
    q = q.reshape(B, N, num_heads, D).astype(jnp.float32)
    k = k.reshape(B, N, num_heads, D).astype(jnp.float32)
    v = v.reshape(B, N, num_heads, D).astype(jnp.float32)
    vpad = jnp.concatenate([v, jnp.ones((B, N, num_heads, 1), jnp.float32)], -1)
    vk = jnp.einsum('bnhe,bnhd->bhed', vpad, k, precision=hp)      # (B,H,D+1,D)
    vkq = jnp.einsum('bhed,bnhd->bnhe', vk, q, precision=hp)       # (B,N,H,D+1)
    proj_in = (vkq[..., :D] / (vkq[..., D:] + eps)).astype(x.dtype)
    proj_in = proj_in.reshape(B, N, C)
    return jnp.dot(proj_in, proj_weight.T, precision=hp) + proj_bias


if __name__ == "__main__":
    B, N, C, H = 2, 256, 256, 8          # D = 32 -> 4-head groups, 128 lanes
    eps = 1e-15

    key = jax.random.PRNGKey(0)
    kx, kq, kp, kb = jax.random.split(key, 4)
    x = jax.random.normal(kx, (B, N, C), jnp.float32)
    qkv_w = jax.random.normal(kq, (3 * C, C), jnp.float32) * 0.1
    proj_w = jax.random.normal(kp, (C, C), jnp.float32) * 0.1
    proj_b = jax.random.normal(kb, (C,), jnp.float32) * 0.1

    # seq_tile=128 exercises the N-tiled vk accumulation (n_tiles=2).
    y = lite_mla_fwd(x, qkv_w, proj_w, proj_b, H, eps, seq_tile=128)
    y = jax.block_until_ready(y)

    y_ref = lite_mla_reference(x, qkv_w, proj_w, proj_b, H, eps)
    assert y.shape == (B, N, C)
    max_err = float(jnp.max(jnp.abs(y - y_ref)))
    assert bool(jnp.allclose(y, y_ref, rtol=1e-2, atol=1e-2)), max_err
    print("KERNEL_OK")
</pallas_src>

<mosaic_0001>
module attributes {stable_mosaic.version = 11 : i64} {
  func.func @_vk_accum_kernel(%arg0: i32, %arg1: i32, %arg2: memref<1x128x256xf32, #tpu.memory_space<vmem>>, %arg3: memref<256x512xf32, #tpu.memory_space<vmem>>, %arg4: memref<128x128xf32, #tpu.memory_space<vmem>>, %arg5: memref<1x2x128x128xf32, #tpu.memory_space<vmem>>, %arg6: memref<1x1x256xf32, #tpu.memory_space<vmem>>) attributes {dimension_semantics = [#tpu.dimension_semantics<parallel>, #tpu.dimension_semantics<arbitrary>], iteration_bounds = array<i64: 2, 2>, scalar_prefetch = 0 : i64, scratch_operands = 0 : i64, tpu.core_type = #tpu.core_type<tc>, window_params = [{transform_indices = @transform_0, window_bounds = array<i64: 1, 128, 256>}, {pipeline_mode = #tpu.pipeline_mode<synchronous>, transform_indices = @transform_1, window_bounds = array<i64: 256, 512>}, {pipeline_mode = #tpu.pipeline_mode<synchronous>, transform_indices = @transform_2, window_bounds = array<i64: 128, 128>}, {transform_indices = @transform_3, window_bounds = array<i64: 1, 2, 128, 128>}, {transform_indices = @transform_4, window_bounds = array<i64: 1, 1, 256>}]} {
    %c0_i32 = arith.constant 0 : i32
    %0 = arith.cmpi eq, %arg1, %c0_i32 : i32
    %1 = arith.extui %0 : i1 to i32
    %c0_i32_0 = arith.constant 0 : i32
    %2 = arith.cmpi ne, %1, %c0_i32_0 : i32
    scf.if %2 {
      %cst_31 = arith.constant 0.000000e+00 : f32
      %40 = vector.broadcast %cst_31 : f32 to vector<2x128x128xf32>
      %c0_32 = arith.constant 0 : index
      %c0_33 = arith.constant 0 : index
      %c0_34 = arith.constant 0 : index
      %c0_35 = arith.constant 0 : index
      %41 = vector.load %arg5[%c0_32, %c0_33, %c0_34, %c0_35] : memref<1x2x128x128xf32, #tpu.memory_space<vmem>>, vector<1x2x128x128xf32>
      %42 = vector.shape_cast %41 : vector<1x2x128x128xf32> to vector<2x128x128xf32>
      %43 = vector.shape_cast %40 : vector<2x128x128xf32> to vector<1x2x128x128xf32>
      tpu.vector_store %arg5[%c0_32, %c0_33, %c0_34, %c0_35], %43 {strides = array<i32>} : memref<1x2x128x128xf32, #tpu.memory_space<vmem>>, vector<1x2x128x128xf32>,
      %cst_36 = arith.constant 0.000000e+00 : f32
      %44 = vector.broadcast %cst_36 : f32 to vector<1x256xf32>
      %c0_37 = arith.constant 0 : index
      %c0_38 = arith.constant 0 : index
      %c0_39 = arith.constant 0 : index
      %45 = vector.load %arg6[%c0_37, %c0_38, %c0_39] : memref<1x1x256xf32, #tpu.memory_space<vmem>>, vector<1x1x256xf32>
      %46 = vector.shape_cast %45 : vector<1x1x256xf32> to vector<1x256xf32>
      %47 = vector.shape_cast %44 : vector<1x256xf32> to vector<1x1x256xf32>
      tpu.vector_store %arg6[%c0_37, %c0_38, %c0_39], %47 {strides = array<i32>} : memref<1x1x256xf32, #tpu.memory_space<vmem>>, vector<1x1x256xf32>,
    } else {
    }
    %c0 = arith.constant 0 : index
    %c0_1 = arith.constant 0 : index
    %c0_2 = arith.constant 0 : index
    %3 = vector.load %arg2[%c0, %c0_1, %c0_2] : memref<1x128x256xf32, #tpu.memory_space<vmem>>, vector<1x128x256xf32>
    %4 = vector.shape_cast %3 : vector<1x128x256xf32> to vector<128x256xf32>
    %c0_3 = arith.constant 0 : index
    %c0_4 = arith.constant 0 : index
    %5 = vector.load %arg3[%c0_3, %c0_4] : memref<256x512xf32, #tpu.memory_space<vmem>>, vector<256x512xf32>
    %cst = arith.constant dense<0.000000e+00> : vector<128x512xf32>
    %6 = tpu.matmul %4, %5, %cst {dimension_numbers = #tpu.dot_dimension_numbers<[1], [0], [0], [1], [0, 0, 1, 1], [], []>} : vector<128x256xf32>, vector<256x512xf32>, vector<128x512xf32> -> vector<128x512xf32>
    %cst_5 = arith.constant 0.000000e+00 : f32
    %7 = vector.broadcast %cst_5 : f32 to vector<128x512xf32>
    %8 = arith.maximumf %6, %7 : vector<128x512xf32>
    %9 = vector.extract_strided_slice %8 {offsets = [0, 0], sizes = [128, 256], strides = [1, 1]} : vector<128x512xf32> to vector<128x256xf32>
    %10 = vector.extract_strided_slice %8 {offsets = [0, 256], sizes = [128, 256], strides = [1, 1]} : vector<128x512xf32> to vector<128x256xf32>
    %c0_6 = arith.constant 0 : index
    %c0_7 = arith.constant 0 : index
    %c0_8 = arith.constant 0 : index
    %11 = vector.load %arg6[%c0_6, %c0_7, %c0_8] : memref<1x1x256xf32, #tpu.memory_space<vmem>>, vector<1x1x256xf32>
    %12 = vector.shape_cast %11 : vector<1x1x256xf32> to vector<1x256xf32>
    %cst_9 = arith.constant dense<0.000000e+00> : vector<256xf32>
    %13 = vector.multi_reduction <add>, %9, %cst_9 [0] : vector<128x256xf32> to vector<256xf32>
    %14 = vector.shape_cast %13 : vector<256xf32> to vector<1x256xf32>
    %15 = arith.addf %12, %14 : vector<1x256xf32>
    %c0_10 = arith.constant 0 : index
    %c0_11 = arith.constant 0 : index
    %c0_12 = arith.constant 0 : index
    %16 = vector.load %arg6[%c0_10, %c0_11, %c0_12] : memref<1x1x256xf32, #tpu.memory_space<vmem>>, vector<1x1x256xf32>
    %17 = vector.shape_cast %16 : vector<1x1x256xf32> to vector<1x256xf32>
    %18 = vector.shape_cast %15 : vector<1x256xf32> to vector<1x1x256xf32>
    tpu.vector_store %arg6[%c0_10, %c0_11, %c0_12], %18 {strides = array<i32>} : memref<1x1x256xf32, #tpu.memory_space<vmem>>, vector<1x1x256xf32>,
    %19 = vector.extract_strided_slice %9 {offsets = [0, 0], sizes = [128, 128], strides = [1, 1]} : vector<128x256xf32> to vector<128x128xf32>
    %20 = vector.extract_strided_slice %10 {offsets = [0, 0], sizes = [128, 128], strides = [1, 1]} : vector<128x256xf32> to vector<128x128xf32>
    %c0_13 = arith.constant 0 : index
    %c0_14 = arith.constant 0 : index
    %c0_15 = arith.constant 0 : index
    %c0_16 = arith.constant 0 : index
    %21 = vector.load %arg5[%c0_13, %c0_14, %c0_15, %c0_16] : memref<1x2x128x128xf32, #tpu.memory_space<vmem>>, vector<1x1x128x128xf32>
    %22 = vector.shape_cast %21 : vector<1x1x128x128xf32> to vector<128x128xf32>
    %cst_17 = arith.constant dense<0.000000e+00> : vector<128x128xf32>
    %23 = tpu.matmul %19, %20, %cst_17 {dimension_numbers = #tpu.dot_dimension_numbers<[0], [0], [1], [1], [0, 1, 1, 1], [], []>} : vector<128x128xf32>, vector<128x128xf32>, vector<128x128xf32> -> vector<128x128xf32>
    %24 = arith.addf %22, %23 : vector<128x128xf32>
    %c0_18 = arith.constant 0 : index
    %c0_19 = arith.constant 0 : index
    %c0_20 = arith.constant 0 : index
    %c0_21 = arith.constant 0 : index
    %25 = vector.load %arg5[%c0_18, %c0_19, %c0_20, %c0_21] : memref<1x2x128x128xf32, #tpu.memory_space<vmem>>, vector<1x1x128x128xf32>
    %26 = vector.shape_cast %25 : vector<1x1x128x128xf32> to vector<128x128xf32>
    %27 = vector.shape_cast %24 : vector<128x128xf32> to vector<1x1x128x128xf32>
    tpu.vector_store %arg5[%c0_18, %c0_19, %c0_20, %c0_21], %27 {strides = array<i32>} : memref<1x2x128x128xf32, #tpu.memory_space<vmem>>, vector<1x1x128x128xf32>,
    %28 = vector.extract_strided_slice %9 {offsets = [0, 128], sizes = [128, 128], strides = [1, 1]} : vector<128x256xf32> to vector<128x128xf32>
    %29 = vector.extract_strided_slice %10 {offsets = [0, 128], sizes = [128, 128], strides = [1, 1]} : vector<128x256xf32> to vector<128x128xf32>
    %c0_22 = arith.constant 0 : index
    %c1 = arith.constant 1 : index
    %c0_23 = arith.constant 0 : index
    %c0_24 = arith.constant 0 : index
    %30 = vector.load %arg5[%c0_22, %c1, %c0_23, %c0_24] : memref<1x2x128x128xf32, #tpu.memory_space<vmem>>, vector<1x1x128x128xf32>
    %31 = vector.shape_cast %30 : vector<1x1x128x128xf32> to vector<128x128xf32>
    %cst_25 = arith.constant dense<0.000000e+00> : vector<128x128xf32>
    %32 = tpu.matmul %28, %29, %cst_25 {dimension_numbers = #tpu.dot_dimension_numbers<[0], [0], [1], [1], [0, 1, 1, 1], [], []>} : vector<128x128xf32>, vector<128x128xf32>, vector<128x128xf32> -> vector<128x128xf32>
    %33 = arith.addf %31, %32 : vector<128x128xf32>
    %c0_26 = arith.constant 0 : index
    %c1_27 = arith.constant 1 : index
    %c0_28 = arith.constant 0 : index
    %c0_29 = arith.constant 0 : index
    %34 = vector.load %arg5[%c0_26, %c1_27, %c0_28, %c0_29] : memref<1x2x128x128xf32, #tpu.memory_space<vmem>>, vector<1x1x128x128xf32>
    %35 = vector.shape_cast %34 : vector<1x1x128x128xf32> to vector<128x128xf32>
    %36 = vector.shape_cast %33 : vector<128x128xf32> to vector<1x1x128x128xf32>
    tpu.vector_store %arg5[%c0_26, %c1_27, %c0_28, %c0_29], %36 {strides = array<i32>} : memref<1x2x128x128xf32, #tpu.memory_space<vmem>>, vector<1x1x128x128xf32>,
    %c1_i32 = arith.constant 1 : i32
    %37 = arith.cmpi eq, %arg1, %c1_i32 : i32
    %38 = arith.extui %37 : i1 to i32
    %c0_i32_30 = arith.constant 0 : i32
    %39 = arith.cmpi ne, %38, %c0_i32_30 : i32
    scf.if %39 {
      %c0_31 = arith.constant 0 : index
      %c0_32 = arith.constant 0 : index
      %c0_33 = arith.constant 0 : index
      %c0_34 = arith.constant 0 : index
      %40 = vector.load %arg5[%c0_31, %c0_32, %c0_33, %c0_34] : memref<1x2x128x128xf32, #tpu.memory_space<vmem>>, vector<1x1x128x128xf32>
      %41 = vector.shape_cast %40 : vector<1x1x128x128xf32> to vector<128x128xf32>
      %c0_35 = arith.constant 0 : index
      %c0_36 = arith.constant 0 : index
      %42 = vector.load %arg4[%c0_35, %c0_36] : memref<128x128xf32, #tpu.memory_space<vmem>>, vector<128x128xf32>
      %43 = arith.mulf %41, %42 : vector<128x128xf32>
      %c0_37 = arith.constant 0 : index
      %c0_38 = arith.constant 0 : index
      %c0_39 = arith.constant 0 : index
      %c0_40 = arith.constant 0 : index
      %44 = vector.load %arg5[%c0_37, %c0_38, %c0_39, %c0_40] : memref<1x2x128x128xf32, #tpu.memory_space<vmem>>, vector<1x1x128x128xf32>
      %45 = vector.shape_cast %44 : vector<1x1x128x128xf32> to vector<128x128xf32>
      %46 = vector.shape_cast %43 : vector<128x128xf32> to vector<1x1x128x128xf32>
      tpu.vector_store %arg5[%c0_37, %c0_38, %c0_39, %c0_40], %46 {strides = array<i32>} : memref<1x2x128x128xf32, #tpu.memory_space<vmem>>, vector<1x1x128x128xf32>,
      %c0_41 = arith.constant 0 : index
      %c1_42 = arith.constant 1 : index
      %c0_43 = arith.constant 0 : index
      %c0_44 = arith.constant 0 : index
      %47 = vector.load %arg5[%c0_41, %c1_42, %c0_43, %c0_44] : memref<1x2x128x128xf32, #tpu.memory_space<vmem>>, vector<1x1x128x128xf32>
      %48 = vector.shape_cast %47 : vector<1x1x128x128xf32> to vector<128x128xf32>
      %c0_45 = arith.constant 0 : index
      %c0_46 = arith.constant 0 : index
      %49 = vector.load %arg4[%c0_45, %c0_46] : memref<128x128xf32, #tpu.memory_space<vmem>>, vector<128x128xf32>
      %50 = arith.mulf %48, %49 : vector<128x128xf32>
      %c0_47 = arith.constant 0 : index
      %c1_48 = arith.constant 1 : index
      %c0_49 = arith.constant 0 : index
      %c0_50 = arith.constant 0 : index
      %51 = vector.load %arg5[%c0_47, %c1_48, %c0_49, %c0_50] : memref<1x2x128x128xf32, #tpu.memory_space<vmem>>, vector<1x1x128x128xf32>
      %52 = vector.shape_cast %51 : vector<1x1x128x128xf32> to vector<128x128xf32>
      %53 = vector.shape_cast %50 : vector<128x128xf32> to vector<1x1x128x128xf32>
      tpu.vector_store %arg5[%c0_47, %c1_48, %c0_49, %c0_50], %53 {strides = array<i32>} : memref<1x2x128x128xf32, #tpu.memory_space<vmem>>, vector<1x1x128x128xf32>,
    } else {
    }
    return
  }
  func.func @transform_0(%arg0: i32, %arg1: i32) -> (i32, i32, i32) {
    %c0_i32 = arith.constant 0 : i32
    %c0_i32_0 = arith.constant 0 : i32
    return %arg0, %arg1, %c0_i32 : i32, i32, i32
  }
  func.func @transform_1(%arg0: i32, %arg1: i32) -> (i32, i32) {
    %c0_i32 = arith.constant 0 : i32
    %c0_i32_0 = arith.constant 0 : i32
    %c0_i32_1 = arith.constant 0 : i32
    return %c0_i32, %c0_i32_0 : i32, i32
  }
  func.func @transform_2(%arg0: i32, %arg1: i32) -> (i32, i32) {
    %c0_i32 = arith.constant 0 : i32
    %c0_i32_0 = arith.constant 0 : i32
    %c0_i32_1 = arith.constant 0 : i32
    return %c0_i32, %c0_i32_0 : i32, i32
  }
  func.func @transform_3(%arg0: i32, %arg1: i32) -> (i32, i32, i32, i32) {
    %c0_i32 = arith.constant 0 : i32
    %c0_i32_0 = arith.constant 0 : i32
    %c0_i32_1 = arith.constant 0 : i32
    %c0_i32_2 = arith.constant 0 : i32
    return %arg0, %c0_i32, %c0_i32_0, %c0_i32_1 : i32, i32, i32, i32
  }
  func.func @transform_4(%arg0: i32, %arg1: i32) -> (i32, i32, i32) {
    %c0_i32 = arith.constant 0 : i32
    %c0_i32_0 = arith.constant 0 : i32
    %c0_i32_1 = arith.constant 0 : i32
    return %arg0, %c0_i32, %c0_i32_0 : i32, i32, i32
  }
}

</mosaic_0001>

<llo_original>
// kernel: tpu_custom_call.1
$region0: #{tpu_custom_call.1}
  #allocation0 [shape = 'u32[]', space=smem, size = 0x4, offset = 0x4, fixed_abs, tag = 'smem constant byte address 0x4 - core index']
  #allocation1 [shape = 'u32[144,128]{1,0:T(1,128)}', space=vmem, size = 0x12000, scoped, tag = 'internal scratch']
  %s0 = inlined_call_operand.hbm [shape: f32[2,256,256], index: 0, kind: input, shape index: {}]
  %s1 = inlined_call_operand.hbm [shape: f32[256,512], index: 1, kind: input, shape index: {}]
  %s2 = inlined_call_operand.hbm [shape: f32[128,128], index: 2, kind: input, shape index: {}]
  %s3 = inlined_call_operand.hbm [shape: f32[2,2,128,128], index: 3, kind: output, shape index: {0}]
  %s4 = inlined_call_operand.hbm [shape: f32[2,1,256], index: 4, kind: output, shape index: {1}]
  %5 = xla_tuple %s3, %s4
  %s6 = sld [smem:[#allocation0]]
  $region73: #{tpu_custom_call.1} parent=0
    _
  %s8 = ssub.s32 1, %s6
  %s9 = scalar_select 0, %s8, %s6
  $region1: #{tpu_custom_call.1} parent=0
    #allocation2 [shape = 'u8[262144]{0}', space=vmem, size = 0x40000, scoped, tag = 'input window, operand 0']
    #allocation3 [shape = 's32[2]{0}', space=sflag, size = 0x8, scoped, tag = 'scoped memory for tpu_custom_call.1']
    #allocation4 [shape = 's32[2]{0}', space=sflag, size = 0x8, scoped, tag = 'scoped memory for tpu_custom_call.1']
    #allocation5 [shape = 'u8[524288]{0}', space=vmem, size = 0x80000, scoped, tag = 'input window, operand 1, single buffered']
    #allocation6 [shape = 's32[1]{0}', space=sflag, size = 0x4, scoped, tag = 'scoped memory for tpu_custom_call.1']
    #allocation7 [shape = 'u8[65536]{0}', space=vmem, size = 0x10000, scoped, tag = 'input window, operand 2, single buffered']
    #allocation8 [shape = 'u8[262144]{0}', space=vmem, size = 0x40000, scoped, tag = 'output window, operand 0']
    #allocation9 [shape = 'u8[2048]{0}', space=vmem, size = 0x800, scoped, tag = 'output window, operand 1']
    #allocation10 [shape = 's32[2]{0}', space=sflag, size = 0x8, scoped, tag = 'scoped memory for tpu_custom_call.1']
    %10 = vsyncpa [#allocation3], 0
    %s11 = scalar_lea.sflag [#allocation3], 1
    %12 = vsyncpa %s11, 0
    %13 = vsyncpa [#allocation6], 0
    %14 = vsyncpa [#allocation4], 0
    %s15 = scalar_lea.sflag [#allocation4], 1
    %16 = vsyncpa %s15, 0
    %17 = vsyncpa [#allocation10], 0
    %s18 = scalar_lea.sflag [#allocation10], 1
    %19 = vsyncpa %s18, 0
    loop: start=0, step=1, limit=6
    $region2: #{tpu_custom_call.1} parent=1 // loop_pre_header
      _
    $region3: #{tpu_custom_call.1} parent=1 // loop_header
      %s21 = sphi 0, %s25
      %p22 = scmp.ge.s32.totalorder %s21, 6
      %s28 = sphi 0, %s40
      %s29 = sphi 0, %s36
      %s30 = sphi 0, %s28
      %s31 = sphi 0, %s29
      %s32 = sphi 0, %s30
      %s33 = sphi 0, %s31
      %s45 = sphi 0, %s47
      %s48 = sphi 0, %s45
      %s49 = sphi 0, %s48
      %s65 = sphi 0, %s49
      %s69 = sphi 0, %s69
      %s71 = sphi 0, %s69
      %s72 = sphi 0, %s71
      %s86 = sphi 0, %s72
      %s90 = sphi 0, %s90
      %s92 = sphi 0, %s90
      %s93 = sphi 0, %s92
      %s107 = sphi 0, %s93
      %s113 = sphi 0, %s115
      %s116 = sphi 0, %s113
      %s117 = sphi 0, %s116
      %s133 = sphi 0, %s117
      %s139 = sphi 0, %s141
      %s142 = sphi 0, %s139
      %s143 = sphi 0, %s142
      %s159 = sphi 0, %s143
    $region4: #{tpu_custom_call.1} parent=1 // loop_header_branch
      %24 = sbr.rel (%p22) target = $region8
    $region5: #{tpu_custom_call.1} parent=1 // loop_body
      %s26 = ssub.s32 %s21, 1
      %s27 = ssub.s32 %s21, 2
      %s34 = sadd.s32 1, %s29
      %p35 = scmp.ge.s32.totalorder %s34, 2
      %s36 = scalar_select %p35, 0, %s34
      %s37 = sadd.s32 1, %s28
      %s38 = scalar_select %p35, %s37, %s28
      %p39 = scmp.ge.s32.totalorder %s38, 2
      %s40 = scalar_select %p39, 0, %s38
      %s41 = ssub.s32 %s28, %s40
      %s42 = ssub.s32 %s29, %s36
      %s43 = sor.u32 %s41, %s42
      %p44 = scmp.eq.s32.totalorder %s43, 0
      %s46 = sadd.s32 %s45, 1
      %s47 = scalar_select %p44, %s45, %s46
      %p50 = pneg %p44
      %p51 = scmp.eq.s32.totalorder %s21, 3
      %p52 = por %p50, %p51
      %p53 = scmp.ne.s32.totalorder %s45, %s48
      %p54 = scmp.eq.s32.totalorder %s21, 0
      %p55 = por %p53, %p54
      %p56 = scmp.ne.s32.totalorder %s45, %s48
      %p57 = scmp.eq.s32.totalorder %s26, 3
      %p58 = por %p56, %p57
      %p59 = scmp.ne.s32.totalorder %s48, %s49
      %p60 = scmp.eq.s32.totalorder %s26, 0
      %p61 = por %p59, %p60
      %p62 = scmp.ne.s32.totalorder %s48, %s49
      %p63 = scmp.eq.s32.totalorder %s27, 3
      %p64 = por %p62, %p63
      %p66 = scmp.ne.s32.totalorder %s49, %s65
      %p67 = scmp.eq.s32.totalorder %s27, 0
      %p68 = por %p66, %p67
      %s70 = sadd.s32 %s69, 1
      %p73 = scmp.eq.s32.totalorder %s21, 3
      %p74 = scmp.ne.s32.totalorder %s69, %s71
      %p75 = scmp.eq.s32.totalorder %s21, 0
      %p76 = por %p74, %p75
      %p77 = scmp.ne.s32.totalorder %s69, %s71
      %p78 = scmp.eq.s32.totalorder %s26, 3
      %p79 = por %p77, %p78
      %p80 = scmp.ne.s32.totalorder %s71, %s72
      %p81 = scmp.eq.s32.totalorder %s26, 0
      %p82 = por %p80, %p81
      %p83 = scmp.ne.s32.totalorder %s71, %s72
      %p84 = scmp.eq.s32.totalorder %s27, 3
      %p85 = por %p83, %p84
      %p87 = scmp.ne.s32.totalorder %s72, %s86
      %p88 = scmp.eq.s32.totalorder %s27, 0
      %p89 = por %p87, %p88
      %s91 = sadd.s32 %s90, 1
      %p94 = scmp.eq.s32.totalorder %s21, 3
      %p95 = scmp.ne.s32.totalorder %s90, %s92
      %p96 = scmp.eq.s32.totalorder %s21, 0
      %p97 = por %p95, %p96
      %p98 = scmp.ne.s32.totalorder %s90, %s92
      %p99 = scmp.eq.s32.totalorder %s26, 3
      %p100 = por %p98, %p99
      %p101 = scmp.ne.s32.totalorder %s92, %s93
      %p102 = scmp.eq.s32.totalorder %s26, 0
      %p103 = por %p101, %p102
      %p104 = scmp.ne.s32.totalorder %s92, %s93
      %p105 = scmp.eq.s32.totalorder %s27, 3
      %p106 = por %p104, %p105
      %p108 = scmp.ne.s32.totalorder %s93, %s107
      %p109 = scmp.eq.s32.totalorder %s27, 0
      %p110 = por %p108, %p109
      %s111 = ssub.s32 %s28, %s40
      %p112 = scmp.eq.s32.totalorder %s111, 0
      %s114 = sadd.s32 %s113, 1
      %s115 = scalar_select %p112, %s113, %s114
      %p118 = pneg %p112
      %p119 = scmp.eq.s32.totalorder %s21, 3
      %p120 = por %p118, %p119
      %p121 = scmp.ne.s32.totalorder %s113, %s116
      %p122 = scmp.eq.s32.totalorder %s21, 0
      %p123 = por %p121, %p122
      %p124 = scmp.ne.s32.totalorder %s113, %s116
      %p125 = scmp.eq.s32.totalorder %s26, 3
      %p126 = por %p124, %p125
      %p127 = scmp.ne.s32.totalorder %s116, %s117
      %p128 = scmp.eq.s32.totalorder %s26, 0
      %p129 = por %p127, %p128
      %p130 = scmp.ne.s32.totalorder %s116, %s117
      %p131 = scmp.eq.s32.totalorder %s27, 3
      %p132 = por %p130, %p131
      %p134 = scmp.ne.s32.totalorder %s117, %s133
      %p135 = scmp.eq.s32.totalorder %s27, 0
      %p136 = por %p134, %p135
      %s137 = ssub.s32 %s28, %s40
      %p138 = scmp.eq.s32.totalorder %s137, 0
      %s140 = sadd.s32 %s139, 1
      %s141 = scalar_select %p138, %s139, %s140
      %p144 = pneg %p138
      %p145 = scmp.eq.s32.totalorder %s21, 3
      %p146 = por %p144, %p145
      %p147 = scmp.ne.s32.totalorder %s139, %s142
      %p148 = scmp.eq.s32.totalorder %s21, 0
      %p149 = por %p147, %p148
      %p150 = scmp.ne.s32.totalorder %s139, %s142
      %p151 = scmp.eq.s32.totalorder %s26, 3
      %p152 = por %p150, %p151
      %p153 = scmp.ne.s32.totalorder %s142, %s143
      %p154 = scmp.eq.s32.totalorder %s26, 0
      %p155 = por %p153, %p154
      %p156 = scmp.ne.s32.totalorder %s142, %s143
      %p157 = scmp.eq.s32.totalorder %s27, 3
      %p158 = por %p156, %p157
      %p160 = scmp.ne.s32.totalorder %s143, %s159
      %p161 = scmp.eq.s32.totalorder %s27, 0
      %p162 = por %p160, %p161
      %p163 = scmp.le.s32.totalorder 1, %s21
      %p164 = scmp.lt.s32.totalorder %s21, 5
      %p165 = pnand %p163, %p164
      %p166 = pneg %p165
      // Predicated region
      $region9: #{tpu_custom_call.1} parent=5 // pred_check
        _
      $region10: #{tpu_custom_call.1} parent=5 // pred_check_branch
        %168 = sbr.rel (%p165) target = $region12
      $region11: #{tpu_custom_call.1} parent=5 // pred_region
        %s169 = ssub.s32 %s21, 1
        // Predicated region
        $region13: #{tpu_custom_call.1} parent=11 // pred_check
          %p170 = pneg %p82
        $region14: #{tpu_custom_call.1} parent=11 // pred_check_branch
          %172 = sbr.rel (%p170) target = $region16
        $region15: #{tpu_custom_call.1} parent=11 // pred_region
          %s174 = ssub.s32 16384, 16384
          %175 = vsyncadd [#allocation6], %s174
          %s176 = sshll.u32 [#allocation5], 4
          %s177 = int_to_ptr.vmem [resolvable:$true] %s176
          %182 = dma.hbm_to_vmem [thread:$0]  %s1, 16384, %s177, [#allocation6], 512, 512, 32
        $region16: #{tpu_custom_call.1} parent=11 // pred_fallthru
          _
        // Predicated region
        $region17: #{tpu_custom_call.1} parent=11 // pred_check
          %p183 = pneg %p103
        $region18: #{tpu_custom_call.1} parent=11 // pred_check_branch
          %185 = sbr.rel (%p183) target = $region20
        $region19: #{tpu_custom_call.1} parent=11 // pred_region
          %s187 = ssub.s32 2048, 2048
          %188 = vsyncadd [#allocation6], %s187
          %s189 = sshll.u32 [#allocation7], 4
          %s190 = int_to_ptr.vmem [resolvable:$true] %s189
          %195 = dma.hbm_to_vmem [thread:$0]  %s2, 2048, %s190, [#allocation6], 128, 128, 8
        $region20: #{tpu_custom_call.1} parent=11 // pred_fallthru
          _
      $region12: #{tpu_custom_call.1} parent=5 // pred_fallthru
        _
      %p196 = scmp.lt.s32.totalorder %s21, 4
      // Predicated region
      $region21: #{tpu_custom_call.1} parent=5 // pred_check
        %p197 = pneg %p196
      $region22: #{tpu_custom_call.1} parent=5 // pred_check_branch
        %199 = sbr.rel (%p197) target = $region24
      $region23: #{tpu_custom_call.1} parent=5 // pred_region
        // Predicated region
        $region25: #{tpu_custom_call.1} parent=23 // pred_check
          %p200 = pneg %p55
        $region26: #{tpu_custom_call.1} parent=23 // pred_check_branch
          %202 = sbr.rel (%p200) target = $region28
        $region27: #{tpu_custom_call.1} parent=23 // pred_region
          %s203 = sand.u32 %s45, 1
          %s204 = scalar_lea.sflag [#allocation3], %s203
          %s205 = sand.u32 %s45, 1
          %s206 = smul.addr %s205, 256
          %s207 = scalar_lea.vmem [#allocation2], %s206
          %s208 = smul.u32 16, %s29
          %s210 = ssub.s32 4096, 4096
          %211 = vsyncadd %s204, %s210
          %s212 = smul.addr %s208, 2
          %s213 = smul.addr %s28, 64
          %s214 = sadd.s32 %s212, %s213
          %s215 = smul.addr %s214, 128
          %s216 = scalar_lea.hbm %s0, %s215
          %s217 = sshll.u32 %s207, 4
          %s218 = int_to_ptr.vmem [resolvable:$true] %s217
          %223 = dma.hbm_to_vmem [thread:$0]  %s216, 4096, %s218, %s204, 256, 256, 16
        $region28: #{tpu_custom_call.1} parent=23 // pred_fallthru
          _
      $region24: #{tpu_custom_call.1} parent=5 // pred_fallthru
        _
      %p224 = scmp.le.s32.totalorder 1, %s21
      %p225 = scmp.lt.s32.totalorder %s21, 5
      %p226 = pnand %p224, %p225
      %p227 = pneg %p226
      // Predicated region
      $region29: #{tpu_custom_call.1} parent=5 // pred_check
        _
      $region30: #{tpu_custom_call.1} parent=5 // pred_check_branch
        %229 = sbr.rel (%p226) target = $region32
      $region31: #{tpu_custom_call.1} parent=5 // pred_region
        %s230 = ssub.s32 %s21, 1
        %s231 = sand.u32 %s48, 1
        %s232 = scalar_lea.sflag [#allocation3], %s231
        %s233 = sand.u32 %s48, 1
        %s234 = smul.addr %s233, 256
        %s235 = scalar_lea.vmem [#allocation2], %s234
        // Predicated region
        $region33: #{tpu_custom_call.1} parent=31 // pred_check
          %p236 = pneg %p61
        $region34: #{tpu_custom_call.1} parent=31 // pred_check_branch
          %238 = sbr.rel (%p236) target = $region36
        $region35: #{tpu_custom_call.1} parent=31 // pred_region
          %239 = dma.done %s232, 4096
        $region36: #{tpu_custom_call.1} parent=31 // pred_fallthru
          _
        // Predicated region
        $region37: #{tpu_custom_call.1} parent=31 // pred_check
          %p240 = pneg %p82
        $region38: #{tpu_custom_call.1} parent=31 // pred_check_branch
          %242 = sbr.rel (%p240) target = $region40
        $region39: #{tpu_custom_call.1} parent=31 // pred_region
          %243 = dma.done [#allocation6], 16384
        $region40: #{tpu_custom_call.1} parent=31 // pred_fallthru
          _
        // Predicated region
        $region41: #{tpu_custom_call.1} parent=31 // pred_check
          %p244 = pneg %p103
        $region42: #{tpu_custom_call.1} parent=31 // pred_check_branch
          %246 = sbr.rel (%p244) target = $region44
        $region43: #{tpu_custom_call.1} parent=31 // pred_region
          %247 = dma.done [#allocation6], 2048
        $region44: #{tpu_custom_call.1} parent=31 // pred_fallthru
          _
        %s248 = sand.u32 %s48, 1
        %s249 = scalar_lea.sflag [#allocation3], %s248
        %s250 = sand.u32 %s48, 1
        %s251 = smul.addr %s250, 256
        %s252 = scalar_lea.vmem [#allocation2], %s251
        %p253 = pneg %p61
        %p254 = pneg %p58
        %p255 = pneg %p82
        %p256 = pneg %p79
        %p257 = pneg %p103
        %p258 = pneg %p100
        %p259 = pneg %p129
        %p260 = pneg %p126
        %s261 = sand.u32 %s116, 1
        %s262 = scalar_lea.sflag [#allocation4], %s261
        %s263 = sand.u32 %s116, 1
        %s264 = smul.addr %s263, 256
        %s265 = scalar_lea.vmem [#allocation8], %s264
        %p266 = pneg %p155
        %p267 = pneg %p152
        %s268 = sand.u32 %s142, 1
        %s269 = scalar_lea.sflag [#allocation10], %s268
        %s270 = sand.u32 %s142, 1
        %s271 = smul.addr %s270, 2
        %s272 = scalar_lea.vmem [#allocation9], %s271
        %s273 = smul.u32 16, %s31
        %p274 = scmp.eq.s32.totalorder %s31, 0
        // Predicated region
        $region45: #{tpu_custom_call.1} parent=31 // pred_check
          %p275 = pneg %p274
        $region46: #{tpu_custom_call.1} parent=31 // pred_check_branch
          %277 = sbr.rel (%p275) target = $region48
        $region47: #{tpu_custom_call.1} parent=31 // pred_region
          %278 = vst [vmem:[%s265] sm:$0xff] 0.0
          %279 = vst [vmem:[%s265 + $0x8] sm:$0xff] 0.0
          %280 = vst [vmem:[%s265 + $0x10] sm:$0xff] 0.0
          %281 = vst [vmem:[%s265 + $0x18] sm:$0xff] 0.0
          %282 = vst [vmem:[%s265 + $0x20] sm:$0xff] 0.0
          %283 = vst [vmem:[%s265 + $0x28] sm:$0xff] 0.0
          %284 = vst [vmem:[%s265 + $0x30] sm:$0xff] 0.0
          %285 = vst [vmem:[%s265 + $0x38] sm:$0xff] 0.0
          %286 = vst [vmem:[%s265 + $0x40] sm:$0xff] 0.0
          %287 = vst [vmem:[%s265 + $0x48] sm:$0xff] 0.0
          %288 = vst [vmem:[%s265 + $0x50] sm:$0xff] 0.0
          %289 = vst [vmem:[%s265 + $0x58] sm:$0xff] 0.0
          %290 = vst [vmem:[%s265 + $0x60] sm:$0xff] 0.0
          %291 = vst [vmem:[%s265 + $0x68] sm:$0xff] 0.0
          %292 = vst [vmem:[%s265 + $0x70] sm:$0xff] 0.0
          %293 = vst [vmem:[%s265 + $0x78] sm:$0xff] 0.0
          %294 = vst [vmem:[%s265 + $0x80] sm:$0xff] 0.0
          %295 = vst [vmem:[%s265 + $0x88] sm:$0xff] 0.0
          %296 = vst [vmem:[%s265 + $0x90] sm:$0xff] 0.0
          %297 = vst [vmem:[%s265 + $0x98] sm:$0xff] 0.0
          %298 = vst [vmem:[%s265 + $0xa0] sm:$0xff] 0.0
          %299 = vst [vmem:[%s265 + $0xa8] sm:$0xff] 0.0
          %300 = vst [vmem:[%s265 + $0xb0] sm:$0xff] 0.0
          %301 = vst [vmem:[%s265 + $0xb8] sm:$0xff] 0.0
          %302 = vst [vmem:[%s265 + $0xc0] sm:$0xff] 0.0
          %303 = vst [vmem:[%s265 + $0xc8] sm:$0xff] 0.0
          %304 = vst [vmem:[%s265 + $0xd0] sm:$0xff] 0.0
          %305 = vst [vmem:[%s265 + $0xd8] sm:$0xff] 0.0
          %306 = vst [vmem:[%s265 + $0xe0] sm:$0xff] 0.0
          %307 = vst [vmem:[%s265 + $0xe8] sm:$0xff] 0.0
          %308 = vst [vmem:[%s265 + $0xf0] sm:$0xff] 0.0
          %309 = vst [vmem:[%s265 + $0xf8] sm:$0xff] 0.0
          %v310 = vlaneseq
          %vm311 = vcmp.ge.s32.totalorder %v310, 0
          %vm312 = vcmp.lt.s32.totalorder %v310, 256
          %vm313 = vmand %vm311, %vm312
          %314 = vst.msk [vmem:[%s272] sm:$0x3] %vm313, 0.0
        $region48: #{tpu_custom_call.1} parent=31 // pred_fallthru
          _
        %v315 = vld [vmem:[%s235] sm:$0xff]
        %v316 = vld [vmem:[%s235 + $0x8] sm:$0xff]
        %v317 = vld [vmem:[%s235 + $0x10] sm:$0xff]
        %v318 = vld [vmem:[%s235 + $0x18] sm:$0xff]
        %v319 = vld [vmem:[%s235 + $0x20] sm:$0xff]
        %v320 = vld [vmem:[%s235 + $0x28] sm:$0xff]
        %v321 = vld [vmem:[%s235 + $0x30] sm:$0xff]
        %v322 = vld [vmem:[%s235 + $0x38] sm:$0xff]
        %v323 = vld [vmem:[%s235 + $0x40] sm:$0xff]
        %v324 = vld [vmem:[%s235 + $0x48] sm:$0xff]
        %v325 = vld [vmem:[%s235 + $0x50] sm:$0xff]
        %v326 = vld [vmem:[%s235 + $0x58] sm:$0xff]
        %v327 = vld [vmem:[%s235 + $0x60] sm:$0xff]
        %v328 = vld [vmem:[%s235 + $0x68] sm:$0xff]
        %v329 = vld [vmem:[%s235 + $0x70] sm:$0xff]
        %v330 = vld [vmem:[%s235 + $0x78] sm:$0xff]
        %v331 = vld [vmem:[%s235 + $0x80] sm:$0xff]
        %v332 = vld [vmem:[%s235 + $0x88] sm:$0xff]
        %v333 = vld [vmem:[%s235 + $0x90] sm:$0xff]
        %v334 = vld [vmem:[%s235 + $0x98] sm:$0xff]
        %v335 = vld [vmem:[%s235 + $0xa0] sm:$0xff]
        %v336 = vld [vmem:[%s235 + $0xa8] sm:$0xff]
        %v337 = vld [vmem:[%s235 + $0xb0] sm:$0xff]
        %v338 = vld [vmem:[%s235 + $0xb8] sm:$0xff]
        %v339 = vld [vmem:[%s235 + $0xc0] sm:$0xff]
        %v340 = vld [vmem:[%s235 + $0xc8] sm:$0xff]
        %v341 = vld [vmem:[%s235 + $0xd0] sm:$0xff]
        %v342 = vld [vmem:[%s235 + $0xd8] sm:$0xff]
        %v343 = vld [vmem:[%s235 + $0xe0] sm:$0xff]
        %v344 = vld [vmem:[%s235 + $0xe8] sm:$0xff]
        %v345 = vld [vmem:[%s235 + $0xf0] sm:$0xff]
        %v346 = vld [vmem:[%s235 + $0xf8] sm:$0xff]
        %v347 = vld [vmem:[#allocation5] sm:$0xff]
        %v348 = vld [vmem:[#allocation5 + $0x8] sm:$0xff]
        %v349 = vld [vmem:[#allocation5 + $0x10] sm:$0xff]
        %v350 = vld [vmem:[#allocation5 + $0x18] sm:$0xff]
        %v351 = vld [vmem:[#allocation5 + $0x20] sm:$0xff]
        %v352 = vld [vmem:[#allocation5 + $0x28] sm:$0xff]
        %v353 = vld [vmem:[#allocation5 + $0x30] sm:$0xff]
        %v354 = vld [vmem:[#allocation5 + $0x38] sm:$0xff]
        %v355 = vld [vmem:[#allocation5 + $0x40] sm:$0xff]
        %v356 = vld [vmem:[#allocation5 + $0x48] sm:$0xff]
        %v357 = vld [vmem:[#allocation5 + $0x50] sm:$0xff]
        %v358 = vld [vmem:[#allocation5 + $0x58] sm:$0xff]
        %v359 = vld [vmem:[#allocation5 + $0x60] sm:$0xff]
        %v360 = vld [vmem:[#allocation5 + $0x68] sm:$0xff]
        %v361 = vld [vmem:[#allocation5 + $0x70] sm:$0xff]
        %v362 = vld [vmem:[#allocation5 + $0x78] sm:$0xff]
        %v363 = vld [vmem:[#allocation5 + $0x80] sm:$0xff]
        %v364 = vld [vmem:[#allocation5 + $0x88] sm:$0xff]
        %v365 = vld [vmem:[#allocation5 + $0x90] sm:$0xff]
        %v366 = vld [vmem:[#allocation5 + $0x98] sm:$0xff]
        %v367 = vld [vmem:[#allocation5 + $0xa0] sm:$0xff]
        %v368 = vld [vmem:[#allocation5 + $0xa8] sm:$0xff]
        %v369 = vld [vmem:[#allocation5 + $0xb0] sm:$0xff]
        %v370 = vld [vmem:[#allocation5 + $0xb8] sm:$0xff]
        %v371 = vld [vmem:[#allocation5 + $0xc0] sm:$0xff]
        %v372 = vld [vmem:[#allocation5 + $0xc8] sm:$0xff]
        %v373 = vld [vmem:[#allocation5 + $0xd0] sm:$0xff]
        %v374 = vld [vmem:[#allocation5 + $0xd8] sm:$0xff]
        %v375 = vld [vmem:[#allocation5 + $0xe0] sm:$0xff]
        %v376 = vld [vmem:[#allocation5 + $0xe8] sm:$0xff]
        %v377 = vld [vmem:[#allocation5 + $0xf0] sm:$0xff]
        %v378 = vld [vmem:[#allocation5 + $0xf8] sm:$0xff]
        %v379 = vld [vmem:[#allocation5 + $0x100] sm:$0xff]
        %v380 = vld [vmem:[#allocation5 + $0x108] sm:$0xff]
        %v381 = vld [vmem:[#allocation5 + $0x110] sm:$0xff]
        %v382 = vld [vmem:[#allocation5 + $0x118] sm:$0xff]
        %v383 = vld [vmem:[#allocation5 + $0x120] sm:$0xff]
        %v384 = vld [vmem:[#allocation5 + $0x128] sm:$0xff]
        %v385 = vld [vmem:[#allocation5 + $0x130] sm:$0xff]
        %v386 = vld [vmem:[#allocation5 + $0x138] sm:$0xff]
        %v387 = vld [vmem:[#allocation5 + $0x140] sm:$0xff]
        %v388 = vld [vmem:[#allocation5 + $0x148] sm:$0xff]
        %v389 = vld [vmem:[#allocation5 + $0x150] sm:$0xff]
        %v390 = vld [vmem:[#allocation5 + $0x158] sm:$0xff]
        %v391 = vld [vmem:[#allocation5 + $0x160] sm:$0xff]
        %v392 = vld [vmem:[#allocation5 + $0x168] sm:$0xff]
        %v393 = vld [vmem:[#allocation5 + $0x170] sm:$0xff]
        %v394 = vld [vmem:[#allocation5 + $0x178] sm:$0xff]
        %v395 = vld [vmem:[#allocation5 + $0x180] sm:$0xff]
        %v396 = vld [vmem:[#allocation5 + $0x188] sm:$0xff]
        %v397 = vld [vmem:[#allocation5 + $0x190] sm:$0xff]
        %v398 = vld [vmem:[#allocation5 + $0x198] sm:$0xff]
        %v399 = vld [vmem:[#allocation5 + $0x1a0] sm:$0xff]
        %v400 = vld [vmem:[#allocation5 + $0x1a8] sm:$0xff]
        %v401 = vld [vmem:[#allocation5 + $0x1b0] sm:$0xff]
        %v402 = vld [vmem:[#allocation5 + $0x1b8] sm:$0xff]
        %v403 = vld [vmem:[#allocation5 + $0x1c0] sm:$0xff]
        %v404 = vld [vmem:[#allocation5 + $0x1c8] sm:$0xff]
        %v405 = vld [vmem:[#allocation5 + $0x1d0] sm:$0xff]
        %v406 = vld [vmem:[#allocation5 + $0x1d8] sm:$0xff]
        %v407 = vld [vmem:[#allocation5 + $0x1e0] sm:$0xff]
        %v408 = vld [vmem:[#allocation5 + $0x1e8] sm:$0xff]
        %v409 = vld [vmem:[#allocation5 + $0x1f0] sm:$0xff]
        %v410 = vld [vmem:[#allocation5 + $0x1f8] sm:$0xff]
        %v411 = vld [vmem:[#allocation5 + $0x200] sm:$0xff]
        %v412 = vld [vmem:[#allocation5 + $0x208] sm:$0xff]
        %v413 = vld [vmem:[#allocation5 + $0x210] sm:$0xff]
        %v414 = vld [vmem:[#allocation5 + $0x218] sm:$0xff]
        %v415 = vld [vmem:[#allocation5 + $0x220] sm:$0xff]
        %v416 = vld [vmem:[#allocation5 + $0x228] sm:$0xff]
        %v417 = vld [vmem:[#allocation5 + $0x230] sm:$0xff]
        %v418 = vld [vmem:[#allocation5 + $0x238] sm:$0xff]
        %v419 = vld [vmem:[#allocation5 + $0x240] sm:$0xff]
        %v420 = vld [vmem:[#allocation5 + $0x248] sm:$0xff]
        %v421 = vld [vmem:[#allocation5 + $0x250] sm:$0xff]
        %v422 = vld [vmem:[#allocation5 + $0x258] sm:$0xff]
        %v423 = vld [vmem:[#allocation5 + $0x260] sm:$0xff]
        %v424 = vld [vmem:[#allocation5 + $0x268] sm:$0xff]
        %v425 = vld [vmem:[#allocation5 + $0x270] sm:$0xff]
        %v426 = vld [vmem:[#allocation5 + $0x278] sm:$0xff]
        %v427 = vld [vmem:[#allocation5 + $0x280] sm:$0xff]
        %v428 = vld [vmem:[#allocation5 + $0x288] sm:$0xff]
        %v429 = vld [vmem:[#allocation5 + $0x290] sm:$0xff]
        %v430 = vld [vmem:[#allocation5 + $0x298] sm:$0xff]
        %v431 = vld [vmem:[#allocation5 + $0x2a0] sm:$0xff]
        %v432 = vld [vmem:[#allocation5 + $0x2a8] sm:$0xff]
        %v433 = vld [vmem:[#allocation5 + $0x2b0] sm:$0xff]
        %v434 = vld [vmem:[#allocation5 + $0x2b8] sm:$0xff]
        %v435 = vld [vmem:[#allocation5 + $0x2c0] sm:$0xff]
        %v436 = vld [vmem:[#allocation5 + $0x2c8] sm:$0xff]
        %v437 = vld [vmem:[#allocation5 + $0x2d0] sm:$0xff]
        %v438 = vld [vmem:[#allocation5 + $0x2d8] sm:$0xff]
        %v439 = vld [vmem:[#allocation5 + $0x2e0] sm:$0xff]
        %v440 = vld [vmem:[#allocation5 + $0x2e8] sm:$0xff]
        %v441 = vld [vmem:[#allocation5 + $0x2f0] sm:$0xff]
        %v442 = vld [vmem:[#allocation5 + $0x2f8] sm:$0xff]
        %v443 = vld [vmem:[#allocation5 + $0x300] sm:$0xff]
        %v444 = vld [vmem:[#allocation5 + $0x308] sm:$0xff]
        %v445 = vld [vmem:[#allocation5 + $0x310] sm:$0xff]
        %v446 = vld [vmem:[#allocation5 + $0x318] sm:$0xff]
        %v447 = vld [vmem:[#allocation5 + $0x320] sm:$0xff]
        %v448 = vld [vmem:[#allocation5 + $0x328] sm:$0xff]
        %v449 = vld [vmem:[#allocation5 + $0x330] sm:$0xff]
        %v450 = vld [vmem:[#allocation5 + $0x338] sm:$0xff]
        %v451 = vld [vmem:[#allocation5 + $0x340] sm:$0xff]
        %v452 = vld [vmem:[#allocation5 + $0x348] sm:$0xff]
        %v453 = vld [vmem:[#allocation5 + $0x350] sm:$0xff]
        %v454 = vld [vmem:[#allocation5 + $0x358] sm:$0xff]
        %v455 = vld [vmem:[#allocation5 + $0x360] sm:$0xff]
        %v456 = vld [vmem:[#allocation5 + $0x368] sm:$0xff]
        %v457 = vld [vmem:[#allocation5 + $0x370] sm:$0xff]
        %v458 = vld [vmem:[#allocation5 + $0x378] sm:$0xff]
        %v459 = vld [vmem:[#allocation5 + $0x380] sm:$0xff]
        %v460 = vld [vmem:[#allocation5 + $0x388] sm:$0xff]
        %v461 = vld [vmem:[#allocation5 + $0x390] sm:$0xff]
        %v462 = vld [vmem:[#allocation5 + $0x398] sm:$0xff]
        %v463 = vld [vmem:[#allocation5 + $0x3a0] sm:$0xff]
        %v464 = vld [vmem:[#allocation5 + $0x3a8] sm:$0xff]
        %v465 = vld [vmem:[#allocation5 + $0x3b0] sm:$0xff]
        %v466 = vld [vmem:[#allocation5 + $0x3b8] sm:$0xff]
        %v467 = vld [vmem:[#allocation5 + $0x3c0] sm:$0xff]
        %v468 = vld [vmem:[#allocation5 + $0x3c8] sm:$0xff]
        %v469 = vld [vmem:[#allocation5 + $0x3d0] sm:$0xff]
        %v470 = vld [vmem:[#allocation5 + $0x3d8] sm:$0xff]
        %v471 = vld [vmem:[#allocation5 + $0x3e0] sm:$0xff]
        %v472 = vld [vmem:[#allocation5 + $0x3e8] sm:$0xff]
        %v473 = vld [vmem:[#allocation5 + $0x3f0] sm:$0xff]
        %v474 = vld [vmem:[#allocation5 + $0x3f8] sm:$0xff]
        %475 = vmatprep.subr.mxu0 %v348
        %476 = vmatpush1.msra.mxu0 %v347
        %477 = vmatprep.subr.mxu0 %v352
        %478 = vmatpush1.msra.mxu0 %v351
        %479 = vmatprep.subr.mxu0 %v356
        %480 = vmatpush1.msra.mxu0 %v355
        %481 = vmatprep.subr.mxu0 %v360
        %482 = vmatpush1.msra.mxu0 %v359
        %483 = vmatprep.subr.mxu0 %v364
        %484 = vmatpush1.msra.mxu0 %v363
        %485 = vmatprep.subr.mxu0 %v368
        %486 = vmatpush1.msra.mxu0 %v367
        %487 = vmatprep.subr.mxu0 %v372
        %488 = vmatpush1.msra.mxu0 %v371
        %489 = vmatprep.subr.mxu0 %v376
        %490 = vmatpush1.msra.mxu0 %v375
        %491 = vmatprep.subr.mxu0 %v380
        %492 = vmatpush1.msra.mxu0 %v379
        %493 = vmatprep.subr.mxu0 %v384
        %494 = vmatpush1.msra.mxu0 %v383
        %495 = vmatprep.subr.mxu0 %v388
        %496 = vmatpush1.msra.mxu0 %v387
        %497 = vmatprep.subr.mxu0 %v392
        %498 = vmatpush1.msra.mxu0 %v391
        %499 = vmatprep.subr.mxu0 %v396
        %500 = vmatpush1.msra.mxu0 %v395
        %501 = vmatprep.subr.mxu0 %v400
        %502 = vmatpush1.msra.mxu0 %v399
        %503 = vmatprep.subr.mxu0 %v404
        %504 = vmatpush1.msra.mxu0 %v403
        %505 = vmatprep.subr.mxu0 %v408
        %506 = vmatpush1.msra.mxu0 %v407
        %507 = vmatprep.subr.mxu0 %v412
        %508 = vmatpush1.msra.mxu0 %v411
        %509 = vmatprep.subr.mxu0 %v416
        %510 = vmatpush1.msra.mxu0 %v415
        %511 = vmatprep.subr.mxu0 %v420
        %512 = vmatpush1.msra.mxu0 %v419
        %513 = vmatprep.subr.mxu0 %v424
        %514 = vmatpush1.msra.mxu0 %v423
        %515 = vmatprep.subr.mxu0 %v428
        %516 = vmatpush1.msra.mxu0 %v427
        %517 = vmatprep.subr.mxu0 %v432
        %518 = vmatpush1.msra.mxu0 %v431
        %519 = vmatprep.subr.mxu0 %v436
        %520 = vmatpush1.msra.mxu0 %v435
        %521 = vmatprep.subr.mxu0 %v440
        %522 = vmatpush1.msra.mxu0 %v439
        %523 = vmatprep.subr.mxu0 %v444
        %524 = vmatpush1.msra.mxu0 %v443
        %525 = vmatprep.subr.mxu0 %v448
        %526 = vmatpush1.msra.mxu0 %v447
        %527 = vmatprep.subr.mxu0 %v452
        %528 = vmatpush1.msra.mxu0 %v451
        %529 = vmatprep.subr.mxu0 %v456
        %530 = vmatpush1.msra.mxu0 %v455
        %531 = vmatprep.subr.mxu0 %v460
        %532 = vmatpush1.msra.mxu0 %v459
        %533 = vmatprep.subr.mxu0 %v464
        %534 = vmatpush1.msra.mxu0 %v463
        %535 = vmatprep.subr.mxu0 %v468
        %536 = vmatpush1.msra.mxu0 %v467
        %537 = vmatprep.subr.mxu0 %v472
        %538 = vmatpush1.msra.mxu0 %v471
        %539 = vmatprep.mubr.f32.mxu0 %v316
        %540 = vmatmul.mubr.f32.gmra.mrb[0].mxu0 %v315
        %v541 = vpop.f32.mrb[0].mxu0
        %v542 = vadd.f32 0.0, %v541
        %v543 = vpop.f32.mrb[0].mxu0
        %v544 = vadd.f32 0.0, %v543
        %545 = vmatprep.mubr.f32.mxu0 %v318
        %546 = vmatmul.mubr.f32.gmra.mrb[0].mxu0 %v317
        %v547 = vpop.f32.mrb[0].mxu0
        %v548 = vadd.f32 0.0, %v547
        %v549 = vpop.f32.mrb[0].mxu0
        %v550 = vadd.f32 0.0, %v549
        %551 = vmatprep.mubr.f32.mxu0 %v320
        %552 = vmatmul.mubr.f32.gmra.mrb[0].mxu0 %v319
        %v553 = vpop.f32.mrb[0].mxu0
        %v554 = vadd.f32 0.0, %v553
        %v555 = vpop.f32.mrb[0].mxu0
        %v556 = vadd.f32 0.0, %v555
        %557 = vmatprep.mubr.f32.mxu0 %v322
        %558 = vmatmul.mubr.f32.gmra.mrb[0].mxu0 %v321
        %v559 = vpop.f32.mrb[0].mxu0
        %v560 = vadd.f32 0.0, %v559
        %v561 = vpop.f32.mrb[0].mxu0
        %v562 = vadd.f32 0.0, %v561
        %563 = vmatprep.mubr.f32.mxu0 %v324
        %564 = vmatmul.mubr.f32.gmra.mrb[0].mxu0 %v323
        %v565 = vpop.f32.mrb[0].mxu0
        %v566 = vadd.f32 0.0, %v565
        %v567 = vpop.f32.mrb[0].mxu0
        %v568 = vadd.f32 0.0, %v567
        %569 = vmatprep.mubr.f32.mxu0 %v326
        %570 = vmatmul.mubr.f32.gmra.mrb[0].mxu0 %v325
        %v571 = vpop.f32.mrb[0].mxu0
        %v572 = vadd.f32 0.0, %v571
        %v573 = vpop.f32.mrb[0].mxu0
        %v574 = vadd.f32 0.0, %v573
        %575 = vmatprep.mubr.f32.mxu0 %v328
        %576 = vmatmul.mubr.f32.gmra.mrb[0].mxu0 %v327
        %v577 = vpop.f32.mrb[0].mxu0
        %v578 = vadd.f32 0.0, %v577
        %v579 = vpop.f32.mrb[0].mxu0
        %v580 = vadd.f32 0.0, %v579
        %581 = vmatprep.mubr.f32.mxu0 %v330
        %582 = vmatmul.mubr.f32.gmra.mrb[0].mxu0 %v329
        %v583 = vpop.f32.mrb[0].mxu0
        %v584 = vadd.f32 0.0, %v583
        %v585 = vpop.f32.mrb[0].mxu0
        %v586 = vadd.f32 0.0, %v585
        %587 = vmatprep.mubr.f32.mxu0 %v332
        %588 = vmatmul.mubr.f32.gmra.mrb[0].mxu0 %v331
        %v589 = vpop.f32.mrb[0].mxu0
        %v590 = vadd.f32 0.0, %v589
        %v591 = vpop.f32.mrb[0].mxu0
        %v592 = vadd.f32 0.0, %v591
        %593 = vmatprep.mubr.f32.mxu0 %v334
        %594 = vmatmul.mubr.f32.gmra.mrb[0].mxu0 %v333
        %v595 = vpop.f32.mrb[0].mxu0
        %v596 = vadd.f32 0.0, %v595
        %v597 = vpop.f32.mrb[0].mxu0
        %v598 = vadd.f32 0.0, %v597
        %599 = vmatprep.mubr.f32.mxu0 %v336
        %600 = vmatmul.mubr.f32.gmra.mrb[0].mxu0 %v335
        %v601 = vpop.f32.mrb[0].mxu0
        %v602 = vadd.f32 0.0, %v601
        %v603 = vpop.f32.mrb[0].mxu0
        %v604 = vadd.f32 0.0, %v603
        %605 = vmatprep.mubr.f32.mxu0 %v338
        %606 = vmatmul.mubr.f32.gmra.mrb[0].mxu0 %v337
        %v607 = vpop.f32.mrb[0].mxu0
        %v608 = vadd.f32 0.0, %v607
        %v609 = vpop.f32.mrb[0].mxu0
        %v610 = vadd.f32 0.0, %v609
        %611 = vmatprep.mubr.f32.mxu0 %v340
        %612 = vmatmul.mubr.f32.gmra.mrb[0].mxu0 %v339
        %v613 = vpop.f32.mrb[0].mxu0
        %v614 = vadd.f32 0.0, %v613
        %v615 = vpop.f32.mrb[0].mxu0
        %v616 = vadd.f32 0.0, %v615
        %617 = vmatprep.mubr.f32.mxu0 %v342
        %618 = vmatmul.mubr.f32.gmra.mrb[0].mxu0 %v341
        %v619 = vpop.f32.mrb[0].mxu0
        %v620 = vadd.f32 0.0, %v619
        %v621 = vpop.f32.mrb[0].mxu0
        %v622 = vadd.f32 0.0, %v621
        %623 = vmatprep.mubr.f32.mxu0 %v344
        %624 = vmatmul.mubr.f32.gmra.mrb[0].mxu0 %v343
        %v625 = vpop.f32.mrb[0].mxu0
        %v626 = vadd.f32 0.0, %v625
        %v627 = vpop.f32.mrb[0].mxu0
        %v628 = vadd.f32 0.0, %v627
        %629 = vmatprep.mubr.f32.mxu0 %v346
        %630 = vmatmul.mubr.f32.gmra.mrb[0].mxu0 %v345
        %v631 = vpop.f32.mrb[0].mxu0
        %v632 = vadd.f32 0.0, %v631
        %v633 = vpop.f32.mrb[0].mxu0
        %v634 = vadd.f32 0.0, %v633
        %635 = vdwg.mxu0
        %636 = vmatprep.subr.mxu0 %v350
        %637 = vmatpush1.msra.mxu0 %v349
        %638 = vmatprep.subr.mxu0 %v354
        %639 = vmatpush1.msra.mxu0 %v353
        %640 = vmatprep.subr.mxu0 %v358
        %641 = vmatpush1.msra.mxu0 %v357
        %642 = vmatprep.subr.mxu0 %v362
        %643 = vmatpush1.msra.mxu0 %v361
        %644 = vmatprep.subr.mxu0 %v366
        %645 = vmatpush1.msra.mxu0 %v365
        %646 = vmatprep.subr.mxu0 %v370
        %647 = vmatpush1.msra.mxu0 %v369
        %648 = vmatprep.subr.mxu0 %v374
        %649 = vmatpush1.msra.mxu0 %v373
        %650 = vmatprep.subr.mxu0 %v378
        %651 = vmatpush1.msra.mxu0 %v377
        %652 = vmatprep.subr.mxu0 %v382
        %653 = vmatpush1.msra.mxu0 %v381
        %654 = vmatprep.subr.mxu0 %v386
        %655 = vmatpush1.msra.mxu0 %v385
        %656 = vmatprep.subr.mxu0 %v390
        %657 = vmatpush1.msra.mxu0 %v389
        %658 = vmatprep.subr.mxu0 %v394
        %659 = vmatpush1.msra.mxu0 %v393
        %660 = vmatprep.subr.mxu0 %v398
        %661 = vmatpush1.msra.mxu0 %v397
        %662 = vmatprep.subr.mxu0 %v402
        %663 = vmatpush1.msra.mxu0 %v401
        %664 = vmatprep.subr.mxu0 %v406
        %665 = vmatpush1.msra.mxu0 %v405
        %666 = vmatprep.subr.mxu0 %v410
        %667 = vmatpush1.msra.mxu0 %v409
        %668 = vmatprep.subr.mxu0 %v414
        %669 = vmatpush1.msra.mxu0 %v413
        %670 = vmatprep.subr.mxu0 %v418
        %671 = vmatpush1.msra.mxu0 %v417
        %672 = vmatprep.subr.mxu0 %v422
        %673 = vmatpush1.msra.mxu0 %v421
        %674 = vmatprep.subr.mxu0 %v426
        %675 = vmatpush1.msra.mxu0 %v425
        %676 = vmatprep.subr.mxu0 %v430
        %677 = vmatpush1.msra.mxu0 %v429
        %678 = vmatprep.subr.mxu0 %v434
        %679 = vmatpush1.msra.mxu0 %v433
        %680 = vmatprep.subr.mxu0 %v438
        %681 = vmatpush1.msra.mxu0 %v437
        %682 = vmatprep.subr.mxu0 %v442
        %683 = vmatpush1.msra.mxu0 %v441
        %684 = vmatprep.subr.mxu0 %v446
        %685 = vmatpush1.msra.mxu0 %v445
        %686 = vmatprep.subr.mxu0 %v450
        %687 = vmatpush1.msra.mxu0 %v449
        %688 = vmatprep.subr.mxu0 %v454
        %689 = vmatpush1.msra.mxu0 %v453
        %690 = vmatprep.subr.mxu0 %v458
        %691 = vmatpush1.msra.mxu0 %v457
        %692 = vmatprep.subr.mxu0 %v462
        %693 = vmatpush1.msra.mxu0 %v461
        %694 = vmatprep.subr.mxu0 %v466
        %695 = vmatpush1.msra.mxu0 %v465
        %696 = vmatprep.subr.mxu0 %v470
        %697 = vmatpush1.msra.mxu0 %v469
        %698 = vmatprep.subr.mxu0 %v474
        %699 = vmatpush1.msra.mxu0 %v473
        %700 = vmatprep.mubr.f32.mxu0 %v316
        %701 = vmatmul.mubr.f32.gmra.mrb[0].mxu0 %v315
        %v702 = vpop.f32.mrb[0].mxu0
        %v703 = vadd.f32 0.0, %v702
        %v704 = vpop.f32.mrb[0].mxu0
        %v705 = vadd.f32 0.0, %v704
        %706 = vmatprep.mubr.f32.mxu0 %v318
        %707 = vmatmul.mubr.f32.gmra.mrb[0].mxu0 %v317
        %v708 = vpop.f32.mrb[0].mxu0
        %v709 = vadd.f32 0.0, %v708
        %v710 = vpop.f32.mrb[0].mxu0
        %v711 = vadd.f32 0.0, %v710
        %712 = vmatprep.mubr.f32.mxu0 %v320
        %713 = vmatmul.mubr.f32.gmra.mrb[0].mxu0 %v319
        %v714 = vpop.f32.mrb[0].mxu0
        %v715 = vadd.f32 0.0, %v714
        %v716 = vpop.f32.mrb[0].mxu0
        %v717 = vadd.f32 0.0, %v716
        %718 = vmatprep.mubr.f32.mxu0 %v322
        %719 = vmatmul.mubr.f32.gmra.mrb[0].mxu0 %v321
        %v720 = vpop.f32.mrb[0].mxu0
        %v721 = vadd.f32 0.0, %v720
        %v722 = vpop.f32.mrb[0].mxu0
        %v723 = vadd.f32 0.0, %v722
        %724 = vmatprep.mubr.f32.mxu0 %v324
        %725 = vmatmul.mubr.f32.gmra.mrb[0].mxu0 %v323
        %v726 = vpop.f32.mrb[0].mxu0
        %v727 = vadd.f32 0.0, %v726
        %v728 = vpop.f32.mrb[0].mxu0
        %v729 = vadd.f32 0.0, %v728
        %730 = vmatprep.mubr.f32.mxu0 %v326
        %731 = vmatmul.mubr.f32.gmra.mrb[0].mxu0 %v325
        %v732 = vpop.f32.mrb[0].mxu0
        %v733 = vadd.f32 0.0, %v732
        %v734 = vpop.f32.mrb[0].mxu0
        %v735 = vadd.f32 0.0, %v734
        %736 = vmatprep.mubr.f32.mxu0 %v328
        %737 = vmatmul.mubr.f32.gmra.mrb[0].mxu0 %v327
        %v738 = vpop.f32.mrb[0].mxu0
        %v739 = vadd.f32 0.0, %v738
        %v740 = vpop.f32.mrb[0].mxu0
        %v741 = vadd.f32 0.0, %v740
        %742 = vmatprep.mubr.f32.mxu0 %v330
        %743 = vmatmul.mubr.f32.gmra.mrb[0].mxu0 %v329
        %v744 = vpop.f32.mrb[0].mxu0
        %v745 = vadd.f32 0.0, %v744
        %v746 = vpop.f32.mrb[0].mxu0
        %v747 = vadd.f32 0.0, %v746
        %748 = vmatprep.mubr.f32.mxu0 %v332
        %749 = vmatmul.mubr.f32.gmra.mrb[0].mxu0 %v331
        %v750 = vpop.f32.mrb[0].mxu0
        %v751 = vadd.f32 0.0, %v750
        %v752 = vpop.f32.mrb[0].mxu0
        %v753 = vadd.f32 0.0, %v752
        %754 = vmatprep.mubr.f32.mxu0 %v334
        %755 = vmatmul.mubr.f32.gmra.mrb[0].mxu0 %v333
        %v756 = vpop.f32.mrb[0].mxu0
        %v757 = vadd.f32 0.0, %v756
        %v758 = vpop.f32.mrb[0].mxu0
        %v759 = vadd.f32 0.0, %v758
        %760 = vmatprep.mubr.f32.mxu0 %v336
        %761 = vmatmul.mubr.f32.gmra.mrb[0].mxu0 %v335
        %v762 = vpop.f32.mrb[0].mxu0
        %v763 = vadd.f32 0.0, %v762
        %v764 = vpop.f32.mrb[0].mxu0
        %v765 = vadd.f32 0.0, %v764
        %766 = vmatprep.mubr.f32.mxu0 %v338
        %767 = vmatmul.mubr.f32.gmra.mrb[0].mxu0 %v337
        %v768 = vpop.f32.mrb[0].mxu0
        %v769 = vadd.f32 0.0, %v768
        %v770 = vpop.f32.mrb[0].mxu0
        %v771 = vadd.f32 0.0, %v770
        %772 = vmatprep.mubr.f32.mxu0 %v340
        %773 = vmatmul.mubr.f32.gmra.mrb[0].mxu0 %v339
        %v774 = vpop.f32.mrb[0].mxu0
        %v775 = vadd.f32 0.0, %v774
        %v776 = vpop.f32.mrb[0].mxu0
        %v777 = vadd.f32 0.0, %v776
        %778 = vmatprep.mubr.f32.mxu0 %v342
        %779 = vmatmul.mubr.f32.gmra.mrb[0].mxu0 %v341
        %v780 = vpop.f32.mrb[0].mxu0
        %v781 = vadd.f32 0.0, %v780
        %v782 = vpop.f32.mrb[0].mxu0
        %v783 = vadd.f32 0.0, %v782
        %784 = vmatprep.mubr.f32.mxu0 %v344
        %785 = vmatmul.mubr.f32.gmra.mrb[0].mxu0 %v343
        %v786 = vpop.f32.mrb[0].mxu0
        %v787 = vadd.f32 0.0, %v786
        %v788 = vpop.f32.mrb[0].mxu0
        %v789 = vadd.f32 0.0, %v788
        %790 = vmatprep.mubr.f32.mxu0 %v346
        %791 = vmatmul.mubr.f32.gmra.mrb[0].mxu0 %v345
        %v792 = vpop.f32.mrb[0].mxu0
        %v793 = vadd.f32 0.0, %v792
        %v794 = vpop.f32.mrb[0].mxu0
        %v795 = vadd.f32 0.0, %v794
        %796 = vdwg.mxu0
        %v797 = vmax.f32 %v542, 0.0
        %v798 = vmax.f32 %v544, 0.0
        %v799 = vmax.f32 %v703, 0.0
        %v800 = vmax.f32 %v705, 0.0
        %v801 = vmax.f32 %v548, 0.0
        %v802 = vmax.f32 %v550, 0.0
        %v803 = vmax.f32 %v709, 0.0
        %v804 = vmax.f32 %v711, 0.0
        %v805 = vmax.f32 %v554, 0.0
        %v806 = vmax.f32 %v556, 0.0
        %v807 = vmax.f32 %v715, 0.0
        %v808 = vmax.f32 %v717, 0.0
        %v809 = vmax.f32 %v560, 0.0
        %v810 = vmax.f32 %v562, 0.0
        %v811 = vmax.f32 %v721, 0.0
        %v812 = vmax.f32 %v723, 0.0
        %v813 = vmax.f32 %v566, 0.0
        %v814 = vmax.f32 %v568, 0.0
        %v815 = vmax.f32 %v727, 0.0
        %v816 = vmax.f32 %v729, 0.0
        %v817 = vmax.f32 %v572, 0.0
        %v818 = vmax.f32 %v574, 0.0
        %v819 = vmax.f32 %v733, 0.0
        %v820 = vmax.f32 %v735, 0.0
        %v821 = vmax.f32 %v578, 0.0
        %v822 = vmax.f32 %v580, 0.0
        %v823 = vmax.f32 %v739, 0.0
        %v824 = vmax.f32 %v741, 0.0
        %v825 = vmax.f32 %v584, 0.0
        %v826 = vmax.f32 %v586, 0.0
        %v827 = vmax.f32 %v745, 0.0
        %v828 = vmax.f32 %v747, 0.0
        %v829 = vmax.f32 %v590, 0.0
        %v830 = vmax.f32 %v592, 0.0
        %v831 = vmax.f32 %v751, 0.0
        %v832 = vmax.f32 %v753, 0.0
        %v833 = vmax.f32 %v596, 0.0
        %v834 = vmax.f32 %v598, 0.0
        %v835 = vmax.f32 %v757, 0.0
        %v836 = vmax.f32 %v759, 0.0
        %v837 = vmax.f32 %v602, 0.0
        %v838 = vmax.f32 %v604, 0.0
        %v839 = vmax.f32 %v763, 0.0
        %v840 = vmax.f32 %v765, 0.0
        %v841 = vmax.f32 %v608, 0.0
        %v842 = vmax.f32 %v610, 0.0
        %v843 = vmax.f32 %v769, 0.0
        %v844 = vmax.f32 %v771, 0.0
        %v845 = vmax.f32 %v614, 0.0
        %v846 = vmax.f32 %v616, 0.0
        %v847 = vmax.f32 %v775, 0.0
        %v848 = vmax.f32 %v777, 0.0
        %v849 = vmax.f32 %v620, 0.0
        %v850 = vmax.f32 %v622, 0.0
        %v851 = vmax.f32 %v781, 0.0
        %v852 = vmax.f32 %v783, 0.0
        %v853 = vmax.f32 %v626, 0.0
        %v854 = vmax.f32 %v628, 0.0
        %v855 = vmax.f32 %v787, 0.0
        %v856 = vmax.f32 %v789, 0.0
        %v857 = vmax.f32 %v632, 0.0
        %v858 = vmax.f32 %v634, 0.0
        %v859 = vmax.f32 %v793, 0.0
        %v860 = vmax.f32 %v795, 0.0
        %v861 = vld [vmem:[%s272] sm:$0x3]
        %v862 = vadd.f32 %v797, %v801
        %v863 = vadd.f32 %v862, %v805
        %v864 = vadd.f32 %v863, %v809
        %v865 = vadd.f32 %v864, %v813
        %v866 = vadd.f32 %v865, %v817
        %v867 = vadd.f32 %v866, %v821
        %v868 = vadd.f32 %v867, %v825
        %v869 = vadd.f32 %v868, %v829
        %v870 = vadd.f32 %v869, %v833
        %v871 = vadd.f32 %v870, %v837
        %v872 = vadd.f32 %v871, %v841
        %v873 = vadd.f32 %v872, %v845
        %v874 = vadd.f32 %v873, %v849
        %v875 = vadd.f32 %v874, %v853
        %v876 = vadd.f32 %v875, %v857
        %v877 = vrot.slane %v876, 4
        %v878 = vadd.f32 %v876, %v877
        %v879 = vrot.slane %v878, 2
        %v880 = vadd.f32 %v878, %v879
        %v881 = vrot.slane %v880, 1
        %v882 = vadd.f32 %v880, %v881
        %v883 = vadd.f32 %v798, %v802
        %v884 = vadd.f32 %v883, %v806
        %v885 = vadd.f32 %v884, %v810
        %v886 = vadd.f32 %v885, %v814
        %v887 = vadd.f32 %v886, %v818
        %v888 = vadd.f32 %v887, %v822
        %v889 = vadd.f32 %v888, %v826
        %v890 = vadd.f32 %v889, %v830
        %v891 = vadd.f32 %v890, %v834
        %v892 = vadd.f32 %v891, %v838
        %v893 = vadd.f32 %v892, %v842
        %v894 = vadd.f32 %v893, %v846
        %v895 = vadd.f32 %v894, %v850
        %v896 = vadd.f32 %v895, %v854
        %v897 = vadd.f32 %v896, %v858
        %v898 = vrot.slane %v897, 4
        %v899 = vadd.f32 %v897, %v898
        %v900 = vrot.slane %v899, 2
        %v901 = vadd.f32 %v899, %v900
        %v902 = vrot.slane %v901, 1
        %v903 = vadd.f32 %v901, %v902
        %v906 = vcombine.low %v882, %v903
        %v908 = vunpack.c.l.s4 1966171168
        %v909 = vunpack.c.0.s8 %v908
        %v910 = vlaneseq
        %v911 = vshrl.u32 %v910, 7
        %v912 = vsub.s32 %v909, %v911
        %v913 = vrot.slane %v906, %v912
        %v915 = vunpack.c.l.s4 1966171168
        %v916 = vunpack.c.0.s8 %v915
        %v917 = vlaneseq
        %v918 = vshrl.u32 %v917, 7
        %v919 = vsub.s32 %v916, %v918
        %v920 = vrot.slane %v913, %v919
        %v922 = vadd.f32 %v861, %v920
        %v923 = vlaneseq
        %vm924 = vcmp.ge.s32.totalorder %v923, 0
        %vm925 = vcmp.lt.s32.totalorder %v923, 256
        %vm926 = vmand %vm924, %vm925
        %927 = vst.msk [vmem:[%s272] sm:$0x3] %vm926, %v922
        %v928 = vld [vmem:[%s265] sm:$0xff]
        %v929 = vld [vmem:[%s265 + $0x8] sm:$0xff]
        %v930 = vld [vmem:[%s265 + $0x10] sm:$0xff]
        %v931 = vld [vmem:[%s265 + $0x18] sm:$0xff]
        %v932 = vld [vmem:[%s265 + $0x20] sm:$0xff]
        %v933 = vld [vmem:[%s265 + $0x28] sm:$0xff]
        %v934 = vld [vmem:[%s265 + $0x30] sm:$0xff]
        %v935 = vld [vmem:[%s265 + $0x38] sm:$0xff]
        %v936 = vld [vmem:[%s265 + $0x40] sm:$0xff]
        %v937 = vld [vmem:[%s265 + $0x48] sm:$0xff]
        %v938 = vld [vmem:[%s265 + $0x50] sm:$0xff]
        %v939 = vld [vmem:[%s265 + $0x58] sm:$0xff]
        %v940 = vld [vmem:[%s265 + $0x60] sm:$0xff]
        %v941 = vld [vmem:[%s265 + $0x68] sm:$0xff]
        %v942 = vld [vmem:[%s265 + $0x70] sm:$0xff]
        %v943 = vld [vmem:[%s265 + $0x78] sm:$0xff]
        %944 = vxpose.xlu0.b32.start [1/16] %v797, 128
        %945 = vxpose.xlu0.b32.cont [2/16] %v801, 128
        %946 = vxpose.xlu0.b32.cont [3/16] %v805, 128
        %947 = vxpose.xlu0.b32.cont [4/16] %v809, 128
        %948 = vxpose.xlu0.b32.cont [5/16] %v813, 128
        %949 = vxpose.xlu0.b32.cont [6/16] %v817, 128
        %950 = vxpose.xlu0.b32.cont [7/16] %v821, 128
        %951 = vxpose.xlu0.b32.cont [8/16] %v825, 128
        %952 = vxpose.xlu0.b32.cont [9/16] %v829, 128
        %953 = vxpose.xlu0.b32.cont [10/16] %v833, 128
        %954 = vxpose.xlu0.b32.cont [11/16] %v837, 128
        %955 = vxpose.xlu0.b32.cont [12/16] %v841, 128
        %956 = vxpose.xlu0.b32.cont [13/16] %v845, 128
        %957 = vxpose.xlu0.b32.cont [14/16] %v849, 128
        %958 = vxpose.xlu0.b32.cont [15/16] %v853, 128
        %959 = vxpose.xlu0.b32.end [16/16] %v857, 128
        %v960 = vpop.trf.xlu0
        %v961 = vpop.trf.xlu0
        %v962 = vpop.trf.xlu0
        %v963 = vpop.trf.xlu0
        %v964 = vpop.trf.xlu0
        %v965 = vpop.trf.xlu0
        %v966 = vpop.trf.xlu0
        %v967 = vpop.trf.xlu0
        %v968 = vpop.trf.xlu0
        %v969 = vpop.trf.xlu0
        %v970 = vpop.trf.xlu0
        %v971 = vpop.trf.xlu0
        %v972 = vpop.trf.xlu0
        %v973 = vpop.trf.xlu0
        %v974 = vpop.trf.xlu0
        %v975 = vpop.trf.xlu0
        %976 = vmatprep.subr.mxu0 0.0
        %977 = vmatpush1.msra.mxu0 %v799
        %978 = vmatprep.subr.mxu0 0.0
        %979 = vmatpush1.msra.mxu0 %v803
        %980 = vmatprep.subr.mxu0 0.0
        %981 = vmatpush1.msra.mxu0 %v807
        %982 = vmatprep.subr.mxu0 0.0
        %983 = vmatpush1.msra.mxu0 %v811
        %984 = vmatprep.subr.mxu0 0.0
        %985 = vmatpush1.msra.mxu0 %v815
        %986 = vmatprep.subr.mxu0 0.0
        %987 = vmatpush1.msra.mxu0 %v819
        %988 = vmatprep.subr.mxu0 0.0
        %989 = vmatpush1.msra.mxu0 %v823
        %990 = vmatprep.subr.mxu0 0.0
        %991 = vmatpush1.msra.mxu0 %v827
        %992 = vmatprep.subr.mxu0 0.0
        %993 = vmatpush1.msra.mxu0 %v831
        %994 = vmatprep.subr.mxu0 0.0
        %995 = vmatpush1.msra.mxu0 %v835
        %996 = vmatprep.subr.mxu0 0.0
        %997 = vmatpush1.msra.mxu0 %v839
        %998 = vmatprep.subr.mxu0 0.0
        %999 = vmatpush1.msra.mxu0 %v843
        %1000 = vmatprep.subr.mxu0 0.0
        %1001 = vmatpush1.msra.mxu0 %v847
        %1002 = vmatprep.subr.mxu0 0.0
        %1003 = vmatpush1.msra.mxu0 %v851
        %1004 = vmatprep.subr.mxu0 0.0
        %1005 = vmatpush1.msra.mxu0 %v855
        %1006 = vmatprep.subr.mxu0 0.0
        %1007 = vmatpush1.msra.mxu0 %v859
        %1008 = vmatprep.subr.mxu0 0.0
        %1009 = vmatpush1.msra.mxu0 0.0
        %1010 = vmatprep.subr.mxu0 0.0
        %1011 = vmatpush1.msra.mxu0 0.0
        %1012 = vmatprep.subr.mxu0 0.0
        %1013 = vmatpush1.msra.mxu0 0.0
        %1014 = vmatprep.subr.mxu0 0.0
        %1015 = vmatpush1.msra.mxu0 0.0
        %1016 = vmatprep.subr.mxu0 0.0
        %1017 = vmatpush1.msra.mxu0 0.0
        %1018 = vmatprep.subr.mxu0 0.0
        %1019 = vmatpush1.msra.mxu0 0.0
        %1020 = vmatprep.subr.mxu0 0.0
        %1021 = vmatpush1.msra.mxu0 0.0
        %1022 = vmatprep.subr.mxu0 0.0
        %1023 = vmatpush1.msra.mxu0 0.0
        %1024 = vmatprep.subr.mxu0 0.0
        %1025 = vmatpush1.msra.mxu0 0.0
        %1026 = vmatprep.subr.mxu0 0.0
        %1027 = vmatpush1.msra.mxu0 0.0
        %1028 = vmatprep.subr.mxu0 0.0
        %1029 = vmatpush1.msra.mxu0 0.0
        %1030 = vmatprep.subr.mxu0 0.0
        %1031 = vmatpush1.msra.mxu0 0.0
        %1032 = vmatprep.subr.mxu0 0.0
        %1033 = vmatpush1.msra.mxu0 0.0
        %1034 = vmatprep.subr.mxu0 0.0
        %1035 = vmatpush1.msra.mxu0 0.0
        %1036 = vmatprep.subr.mxu0 0.0
        %1037 = vmatpush1.msra.mxu0 0.0
        %1038 = vmatprep.subr.mxu0 0.0
        %1039 = vmatpush1.msra.mxu0 0.0
        %1040 = vmatprep.mubr.f32.mxu0 0.0
        %1041 = vmatmul.mubr.f32.gmra.mrb[0].mxu0 %v960
        %v1042 = vpop.f32.mrb[0].mxu0
        %v1043 = vadd.f32 0.0, %v1042
        %v1044 = vpop.f32.mrb[0].mxu0
        %1045 = vmatprep.mubr.f32.mxu0 0.0
        %1046 = vmatmul.mubr.f32.gmra.mrb[0].mxu0 %v961
        %v1047 = vpop.f32.mrb[0].mxu0
        %v1048 = vadd.f32 0.0, %v1047
        %v1049 = vpop.f32.mrb[0].mxu0
        %1050 = vmatprep.mubr.f32.mxu0 0.0
        %1051 = vmatmul.mubr.f32.gmra.mrb[0].mxu0 %v962
        %v1052 = vpop.f32.mrb[0].mxu0
        %v1053 = vadd.f32 0.0, %v1052
        %v1054 = vpop.f32.mrb[0].mxu0
        %1055 = vmatprep.mubr.f32.mxu0 0.0
        %1056 = vmatmul.mubr.f32.gmra.mrb[0].mxu0 %v963
        %v1057 = vpop.f32.mrb[0].mxu0
        %v1058 = vadd.f32 0.0, %v1057
        %v1059 = vpop.f32.mrb[0].mxu0
        %1060 = vmatprep.mubr.f32.mxu0 0.0
        %1061 = vmatmul.mubr.f32.gmra.mrb[0].mxu0 %v964
        %v1062 = vpop.f32.mrb[0].mxu0
        %v1063 = vadd.f32 0.0, %v1062
        %v1064 = vpop.f32.mrb[0].mxu0
        %1065 = vmatprep.mubr.f32.mxu0 0.0
        %1066 = vmatmul.mubr.f32.gmra.mrb[0].mxu0 %v965
        %v1067 = vpop.f32.mrb[0].mxu0
        %v1068 = vadd.f32 0.0, %v1067
        %v1069 = vpop.f32.mrb[0].mxu0
        %1070 = vmatprep.mubr.f32.mxu0 0.0
        %1071 = vmatmul.mubr.f32.gmra.mrb[0].mxu0 %v966
        %v1072 = vpop.f32.mrb[0].mxu0
        %v1073 = vadd.f32 0.0, %v1072
        %v1074 = vpop.f32.mrb[0].mxu0
        %1075 = vmatprep.mubr.f32.mxu0 0.0
        %1076 = vmatmul.mubr.f32.gmra.mrb[0].mxu0 %v967
        %v1077 = vpop.f32.mrb[0].mxu0
        %v1078 = vadd.f32 0.0, %v1077
        %v1079 = vpop.f32.mrb[0].mxu0
        %1080 = vmatprep.mubr.f32.mxu0 0.0
        %1081 = vmatmul.mubr.f32.gmra.mrb[0].mxu0 %v968
        %v1082 = vpop.f32.mrb[0].mxu0
        %v1083 = vadd.f32 0.0, %v1082
        %v1084 = vpop.f32.mrb[0].mxu0
        %1085 = vmatprep.mubr.f32.mxu0 0.0
        %1086 = vmatmul.mubr.f32.gmra.mrb[0].mxu0 %v969
        %v1087 = vpop.f32.mrb[0].mxu0
        %v1088 = vadd.f32 0.0, %v1087
        %v1089 = vpop.f32.mrb[0].mxu0
        %1090 = vmatprep.mubr.f32.mxu0 0.0
        %1091 = vmatmul.mubr.f32.gmra.mrb[0].mxu0 %v970
        %v1092 = vpop.f32.mrb[0].mxu0
        %v1093 = vadd.f32 0.0, %v1092
        %v1094 = vpop.f32.mrb[0].mxu0
        %1095 = vmatprep.mubr.f32.mxu0 0.0
        %1096 = vmatmul.mubr.f32.gmra.mrb[0].mxu0 %v971
        %v1097 = vpop.f32.mrb[0].mxu0
        %v1098 = vadd.f32 0.0, %v1097
        %v1099 = vpop.f32.mrb[0].mxu0
        %1100 = vmatprep.mubr.f32.mxu0 0.0
        %1101 = vmatmul.mubr.f32.gmra.mrb[0].mxu0 %v972
        %v1102 = vpop.f32.mrb[0].mxu0
        %v1103 = vadd.f32 0.0, %v1102
        %v1104 = vpop.f32.mrb[0].mxu0
        %1105 = vmatprep.mubr.f32.mxu0 0.0
        %1106 = vmatmul.mubr.f32.gmra.mrb[0].mxu0 %v973
        %v1107 = vpop.f32.mrb[0].mxu0
        %v1108 = vadd.f32 0.0, %v1107
        %v1109 = vpop.f32.mrb[0].mxu0
        %1110 = vmatprep.mubr.f32.mxu0 0.0
        %1111 = vmatmul.mubr.f32.gmra.mrb[0].mxu0 %v974
        %v1112 = vpop.f32.mrb[0].mxu0
        %v1113 = vadd.f32 0.0, %v1112
        %v1114 = vpop.f32.mrb[0].mxu0
        %1115 = vmatprep.mubr.f32.mxu0 0.0
        %1116 = vmatmul.mubr.f32.gmra.mrb[0].mxu0 %v975
        %v1117 = vpop.f32.mrb[0].mxu0
        %v1118 = vadd.f32 0.0, %v1117
        %v1119 = vpop.f32.mrb[0].mxu0
        %1120 = vdwg.mxu0
        %v1121 = vadd.f32 %v928, %v1043
        %v1122 = vadd.f32 %v929, %v1048
        %v1123 = vadd.f32 %v930, %v1053
        %v1124 = vadd.f32 %v931, %v1058
        %v1125 = vadd.f32 %v932, %v1063
        %v1126 = vadd.f32 %v933, %v1068
        %v1127 = vadd.f32 %v934, %v1073
        %v1128 = vadd.f32 %v935, %v1078
        %v1129 = vadd.f32 %v936, %v1083
        %v1130 = vadd.f32 %v937, %v1088
        %v1131 = vadd.f32 %v938, %v1093
        %v1132 = vadd.f32 %v939, %v1098
        %v1133 = vadd.f32 %v940, %v1103
        %v1134 = vadd.f32 %v941, %v1108
        %v1135 = vadd.f32 %v942, %v1113
        %v1136 = vadd.f32 %v943, %v1118
        %1137 = vst [vmem:[%s265] sm:$0xff] %v1121
        %1138 = vst [vmem:[%s265 + $0x8] sm:$0xff] %v1122
        %1139 = vst [vmem:[%s265 + $0x10] sm:$0xff] %v1123
        %1140 = vst [vmem:[%s265 + $0x18] sm:$0xff] %v1124
        %1141 = vst [vmem:[%s265 + $0x20] sm:$0xff] %v1125
        %1142 = vst [vmem:[%s265 + $0x28] sm:$0xff] %v1126
        %1143 = vst [vmem:[%s265 + $0x30] sm:$0xff] %v1127
        %1144 = vst [vmem:[%s265 + $0x38] sm:$0xff] %v1128
        %1145 = vst [vmem:[%s265 + $0x40] sm:$0xff] %v1129
        %1146 = vst [vmem:[%s265 + $0x48] sm:$0xff] %v1130
        %1147 = vst [vmem:[%s265 + $0x50] sm:$0xff] %v1131
        %1148 = vst [vmem:[%s265 + $0x58] sm:$0xff] %v1132
        %1149 = vst [vmem:[%s265 + $0x60] sm:$0xff] %v1133
        %1150 = vst [vmem:[%s265 + $0x68] sm:$0xff] %v1134
        %1151 = vst [vmem:[%s265 + $0x70] sm:$0xff] %v1135
        %1152 = vst [vmem:[%s265 + $0x78] sm:$0xff] %v1136
        %s1153 = scalar_lea.vmem %s265, 128 [#allocation8]
        %v1154 = vld [vmem:[%s1153] sm:$0xff]
        %v1155 = vld [vmem:[%s1153 + $0x8] sm:$0xff]
        %v1156 = vld [vmem:[%s1153 + $0x10] sm:$0xff]
        %v1157 = vld [vmem:[%s1153 + $0x18] sm:$0xff]
        %v1158 = vld [vmem:[%s1153 + $0x20] sm:$0xff]
        %v1159 = vld [vmem:[%s1153 + $0x28] sm:$0xff]
        %v1160 = vld [vmem:[%s1153 + $0x30] sm:$0xff]
        %v1161 = vld [vmem:[%s1153 + $0x38] sm:$0xff]
        %v1162 = vld [vmem:[%s1153 + $0x40] sm:$0xff]
        %v1163 = vld [vmem:[%s1153 + $0x48] sm:$0xff]
        %v1164 = vld [vmem:[%s1153 + $0x50] sm:$0xff]
        %v1165 = vld [vmem:[%s1153 + $0x58] sm:$0xff]
        %v1166 = vld [vmem:[%s1153 + $0x60] sm:$0xff]
        %v1167 = vld [vmem:[%s1153 + $0x68] sm:$0xff]
        %v1168 = vld [vmem:[%s1153 + $0x70] sm:$0xff]
        %v1169 = vld [vmem:[%s1153 + $0x78] sm:$0xff]
        %1170 = vxpose.xlu0.b32.start [1/16] %v798, 128
        %1171 = vxpose.xlu0.b32.cont [2/16] %v802, 128
        %1172 = vxpose.xlu0.b32.cont [3/16] %v806, 128
        %1173 = vxpose.xlu0.b32.cont [4/16] %v810, 128
        %1174 = vxpose.xlu0.b32.cont [5/16] %v814, 128
        %1175 = vxpose.xlu0.b32.cont [6/16] %v818, 128
        %1176 = vxpose.xlu0.b32.cont [7/16] %v822, 128
        %1177 = vxpose.xlu0.b32.cont [8/16] %v826, 128
        %1178 = vxpose.xlu0.b32.cont [9/16] %v830, 128
        %1179 = vxpose.xlu0.b32.cont [10/16] %v834, 128
        %1180 = vxpose.xlu0.b32.cont [11/16] %v838, 128
        %1181 = vxpose.xlu0.b32.cont [12/16] %v842, 128
        %1182 = vxpose.xlu0.b32.cont [13/16] %v846, 128
        %1183 = vxpose.xlu0.b32.cont [14/16] %v850, 128
        %1184 = vxpose.xlu0.b32.cont [15/16] %v854, 128
        %1185 = vxpose.xlu0.b32.end [16/16] %v858, 128
        %v1186 = vpop.trf.xlu0
        %v1187 = vpop.trf.xlu0
        %v1188 = vpop.trf.xlu0
        %v1189 = vpop.trf.xlu0
        %v1190 = vpop.trf.xlu0
        %v1191 = vpop.trf.xlu0
        %v1192 = vpop.trf.xlu0
        %v1193 = vpop.trf.xlu0
        %v1194 = vpop.trf.xlu0
        %v1195 = vpop.trf.xlu0
        %v1196 = vpop.trf.xlu0
        %v1197 = vpop.trf.xlu0
        %v1198 = vpop.trf.xlu0
        %v1199 = vpop.trf.xlu0
        %v1200 = vpop.trf.xlu0
        %v1201 = vpop.trf.xlu0
        %1202 = vmatprep.subr.mxu0 0.0
        %1203 = vmatpush1.msra.mxu0 %v800
        %1204 = vmatprep.subr.mxu0 0.0
        %1205 = vmatpush1.msra.mxu0 %v804
        %1206 = vmatprep.subr.mxu0 0.0
        %1207 = vmatpush1.msra.mxu0 %v808
        %1208 = vmatprep.subr.mxu0 0.0
        %1209 = vmatpush1.msra.mxu0 %v812
        %1210 = vmatprep.subr.mxu0 0.0
        %1211 = vmatpush1.msra.mxu0 %v816
        %1212 = vmatprep.subr.mxu0 0.0
        %1213 = vmatpush1.msra.mxu0 %v820
        %1214 = vmatprep.subr.mxu0 0.0
        %1215 = vmatpush1.msra.mxu0 %v824
        %1216 = vmatprep.subr.mxu0 0.0
        %1217 = vmatpush1.msra.mxu0 %v828
        %1218 = vmatprep.subr.mxu0 0.0
        %1219 = vmatpush1.msra.mxu0 %v832
        %1220 = vmatprep.subr.mxu0 0.0
        %1221 = vmatpush1.msra.mxu0 %v836
        %1222 = vmatprep.subr.mxu0 0.0
        %1223 = vmatpush1.msra.mxu0 %v840
        %1224 = vmatprep.subr.mxu0 0.0
        %1225 = vmatpush1.msra.mxu0 %v844
        %1226 = vmatprep.subr.mxu0 0.0
        %1227 = vmatpush1.msra.mxu0 %v848
        %1228 = vmatprep.subr.mxu0 0.0
        %1229 = vmatpush1.msra.mxu0 %v852
        %1230 = vmatprep.subr.mxu0 0.0
        %1231 = vmatpush1.msra.mxu0 %v856
        %1232 = vmatprep.subr.mxu0 0.0
        %1233 = vmatpush1.msra.mxu0 %v860
        %1234 = vmatprep.subr.mxu0 0.0
        %1235 = vmatpush1.msra.mxu0 0.0
        %1236 = vmatprep.subr.mxu0 0.0
        %1237 = vmatpush1.msra.mxu0 0.0
        %1238 = vmatprep.subr.mxu0 0.0
        %1239 = vmatpush1.msra.mxu0 0.0
        %1240 = vmatprep.subr.mxu0 0.0
        %1241 = vmatpush1.msra.mxu0 0.0
        %1242 = vmatprep.subr.mxu0 0.0
        %1243 = vmatpush1.msra.mxu0 0.0
        %1244 = vmatprep.subr.mxu0 0.0
        %1245 = vmatpush1.msra.mxu0 0.0
        %1246 = vmatprep.subr.mxu0 0.0
        %1247 = vmatpush1.msra.mxu0 0.0
        %1248 = vmatprep.subr.mxu0 0.0
        %1249 = vmatpush1.msra.mxu0 0.0
        %1250 = vmatprep.subr.mxu0 0.0
        %1251 = vmatpush1.msra.mxu0 0.0
        %1252 = vmatprep.subr.mxu0 0.0
        %1253 = vmatpush1.msra.mxu0 0.0
        %1254 = vmatprep.subr.mxu0 0.0
        %1255 = vmatpush1.msra.mxu0 0.0
        %1256 = vmatprep.subr.mxu0 0.0
        %1257 = vmatpush1.msra.mxu0 0.0
        %1258 = vmatprep.subr.mxu0 0.0
        %1259 = vmatpush1.msra.mxu0 0.0
        %1260 = vmatprep.subr.mxu0 0.0
        %1261 = vmatpush1.msra.mxu0 0.0
        %1262 = vmatprep.subr.mxu0 0.0
        %1263 = vmatpush1.msra.mxu0 0.0
        %1264 = vmatprep.subr.mxu0 0.0
        %1265 = vmatpush1.msra.mxu0 0.0
        %1266 = vmatprep.mubr.f32.mxu0 0.0
        %1267 = vmatmul.mubr.f32.gmra.mrb[0].mxu0 %v1186
        %v1268 = vpop.f32.mrb[0].mxu0
        %v1269 = vadd.f32 0.0, %v1268
        %v1270 = vpop.f32.mrb[0].mxu0
        %1271 = vmatprep.mubr.f32.mxu0 0.0
        %1272 = vmatmul.mubr.f32.gmra.mrb[0].mxu0 %v1187
        %v1273 = vpop.f32.mrb[0].mxu0
        %v1274 = vadd.f32 0.0, %v1273
        %v1275 = vpop.f32.mrb[0].mxu0
        %1276 = vmatprep.mubr.f32.mxu0 0.0
        %1277 = vmatmul.mubr.f32.gmra.mrb[0].mxu0 %v1188
        %v1278 = vpop.f32.mrb[0].mxu0
        %v1279 = vadd.f32 0.0, %v1278
        %v1280 = vpop.f32.mrb[0].mxu0
        %1281 = vmatprep.mubr.f32.mxu0 0.0
        %1282 = vmatmul.mubr.f32.gmra.mrb[0].mxu0 %v1189
        %v1283 = vpop.f32.mrb[0].mxu0
        %v1284 = vadd.f32 0.0, %v1283
        %v1285 = vpop.f32.mrb[0].mxu0
        %1286 = vmatprep.mubr.f32.mxu0 0.0
        %1287 = vmatmul.mubr.f32.gmra.mrb[0].mxu0 %v1190
        %v1288 = vpop.f32.mrb[0].mxu0
        %v1289 = vadd.f32 0.0, %v1288
        %v1290 = vpop.f32.mrb[0].mxu0
        %1291 = vmatprep.mubr.f32.mxu0 0.0
        %1292 = vmatmul.mubr.f32.gmra.mrb[0].mxu0 %v1191
        %v1293 = vpop.f32.mrb[0].mxu0
        %v1294 = vadd.f32 0.0, %v1293
        %v1295 = vpop.f32.mrb[0].mxu0
        %1296 = vmatprep.mubr.f32.mxu0 0.0
        %1297 = vmatmul.mubr.f32.gmra.mrb[0].mxu0 %v1192
        %v1298 = vpop.f32.mrb[0].mxu0
        %v1299 = vadd.f32 0.0, %v1298
        %v1300 = vpop.f32.mrb[0].mxu0
        %1301 = vmatprep.mubr.f32.mxu0 0.0
        %1302 = vmatmul.mubr.f32.gmra.mrb[0].mxu0 %v1193
        %v1303 = vpop.f32.mrb[0].mxu0
        %v1304 = vadd.f32 0.0, %v1303
        %v1305 = vpop.f32.mrb[0].mxu0
        %1306 = vmatprep.mubr.f32.mxu0 0.0
        %1307 = vmatmul.mubr.f32.gmra.mrb[0].mxu0 %v1194
        %v1308 = vpop.f32.mrb[0].mxu0
        %v1309 = vadd.f32 0.0, %v1308
        %v1310 = vpop.f32.mrb[0].mxu0
        %1311 = vmatprep.mubr.f32.mxu0 0.0
        %1312 = vmatmul.mubr.f32.gmra.mrb[0].mxu0 %v1195
        %v1313 = vpop.f32.mrb[0].mxu0
        %v1314 = vadd.f32 0.0, %v1313
        %v1315 = vpop.f32.mrb[0].mxu0
        %1316 = vmatprep.mubr.f32.mxu0 0.0
        %1317 = vmatmul.mubr.f32.gmra.mrb[0].mxu0 %v1196
        %v1318 = vpop.f32.mrb[0].mxu0
        %v1319 = vadd.f32 0.0, %v1318
        %v1320 = vpop.f32.mrb[0].mxu0
        %1321 = vmatprep.mubr.f32.mxu0 0.0
        %1322 = vmatmul.mubr.f32.gmra.mrb[0].mxu0 %v1197
        %v1323 = vpop.f32.mrb[0].mxu0
        %v1324 = vadd.f32 0.0, %v1323
        %v1325 = vpop.f32.mrb[0].mxu0
        %1326 = vmatprep.mubr.f32.mxu0 0.0
        %1327 = vmatmul.mubr.f32.gmra.mrb[0].mxu0 %v1198
        %v1328 = vpop.f32.mrb[0].mxu0
        %v1329 = vadd.f32 0.0, %v1328
        %v1330 = vpop.f32.mrb[0].mxu0
        %1331 = vmatprep.mubr.f32.mxu0 0.0
        %1332 = vmatmul.mubr.f32.gmra.mrb[0].mxu0 %v1199
        %v1333 = vpop.f32.mrb[0].mxu0
        %v1334 = vadd.f32 0.0, %v1333
        %v1335 = vpop.f32.mrb[0].mxu0
        %1336 = vmatprep.mubr.f32.mxu0 0.0
        %1337 = vmatmul.mubr.f32.gmra.mrb[0].mxu0 %v1200
        %v1338 = vpop.f32.mrb[0].mxu0
        %v1339 = vadd.f32 0.0, %v1338
        %v1340 = vpop.f32.mrb[0].mxu0
        %1341 = vmatprep.mubr.f32.mxu0 0.0
        %1342 = vmatmul.mubr.f32.gmra.mrb[0].mxu0 %v1201
        %v1343 = vpop.f32.mrb[0].mxu0
        %v1344 = vadd.f32 0.0, %v1343
        %v1345 = vpop.f32.mrb[0].mxu0
        %1346 = vdwg.mxu0
        %v1347 = vadd.f32 %v1154, %v1269
        %v1348 = vadd.f32 %v1155, %v1274
        %v1349 = vadd.f32 %v1156, %v1279
        %v1350 = vadd.f32 %v1157, %v1284
        %v1351 = vadd.f32 %v1158, %v1289
        %v1352 = vadd.f32 %v1159, %v1294
        %v1353 = vadd.f32 %v1160, %v1299
        %v1354 = vadd.f32 %v1161, %v1304
        %v1355 = vadd.f32 %v1162, %v1309
        %v1356 = vadd.f32 %v1163, %v1314
        %v1357 = vadd.f32 %v1164, %v1319
        %v1358 = vadd.f32 %v1165, %v1324
        %v1359 = vadd.f32 %v1166, %v1329
        %v1360 = vadd.f32 %v1167, %v1334
        %v1361 = vadd.f32 %v1168, %v1339
        %v1362 = vadd.f32 %v1169, %v1344
        %1363 = vst [vmem:[%s1153] sm:$0xff] %v1347
        %1364 = vst [vmem:[%s1153 + $0x8] sm:$0xff] %v1348
        %1365 = vst [vmem:[%s1153 + $0x10] sm:$0xff] %v1349
        %1366 = vst [vmem:[%s1153 + $0x18] sm:$0xff] %v1350
        %1367 = vst [vmem:[%s1153 + $0x20] sm:$0xff] %v1351
        %1368 = vst [vmem:[%s1153 + $0x28] sm:$0xff] %v1352
        %1369 = vst [vmem:[%s1153 + $0x30] sm:$0xff] %v1353
        %1370 = vst [vmem:[%s1153 + $0x38] sm:$0xff] %v1354
        %1371 = vst [vmem:[%s1153 + $0x40] sm:$0xff] %v1355
        %1372 = vst [vmem:[%s1153 + $0x48] sm:$0xff] %v1356
        %1373 = vst [vmem:[%s1153 + $0x50] sm:$0xff] %v1357
        %1374 = vst [vmem:[%s1153 + $0x58] sm:$0xff] %v1358
        %1375 = vst [vmem:[%s1153 + $0x60] sm:$0xff] %v1359
        %1376 = vst [vmem:[%s1153 + $0x68] sm:$0xff] %v1360
        %1377 = vst [vmem:[%s1153 + $0x70] sm:$0xff] %v1361
        %1378 = vst [vmem:[%s1153 + $0x78] sm:$0xff] %v1362
        %p1379 = scmp.eq.s32.totalorder %s31, 1
        // Predicated region
        $region49: #{tpu_custom_call.1} parent=31 // pred_check
          %p1380 = pneg %p1379
        $region50: #{tpu_custom_call.1} parent=31 // pred_check_branch
          %1382 = sbr.rel (%p1380) target = $region52
        $region51: #{tpu_custom_call.1} parent=31 // pred_region
          %v1383 = vld [vmem:[%s265] sm:$0xff]
          %v1384 = vld [vmem:[%s265 + $0x8] sm:$0xff]
          %v1385 = vld [vmem:[%s265 + $0x10] sm:$0xff]
          %v1386 = vld [vmem:[%s265 + $0x18] sm:$0xff]
          %v1387 = vld [vmem:[%s265 + $0x20] sm:$0xff]
          %v1388 = vld [vmem:[%s265 + $0x28] sm:$0xff]
          %v1389 = vld [vmem:[%s265 + $0x30] sm:$0xff]
          %v1390 = vld [vmem:[%s265 + $0x38] sm:$0xff]
          %v1391 = vld [vmem:[%s265 + $0x40] sm:$0xff]
          %v1392 = vld [vmem:[%s265 + $0x48] sm:$0xff]
          %v1393 = vld [vmem:[%s265 + $0x50] sm:$0xff]
          %v1394 = vld [vmem:[%s265 + $0x58] sm:$0xff]
          %v1395 = vld [vmem:[%s265 + $0x60] sm:$0xff]
          %v1396 = vld [vmem:[%s265 + $0x68] sm:$0xff]
          %v1397 = vld [vmem:[%s265 + $0x70] sm:$0xff]
          %v1398 = vld [vmem:[%s265 + $0x78] sm:$0xff]
          %v1399 = vld [vmem:[#allocation7] sm:$0xff]
          %v1400 = vld [vmem:[#allocation7 + $0x8] sm:$0xff]
          %v1401 = vld [vmem:[#allocation7 + $0x10] sm:$0xff]
          %v1402 = vld [vmem:[#allocation7 + $0x18] sm:$0xff]
          %v1403 = vld [vmem:[#allocation7 + $0x20] sm:$0xff]
          %v1404 = vld [vmem:[#allocation7 + $0x28] sm:$0xff]
          %v1405 = vld [vmem:[#allocation7 + $0x30] sm:$0xff]
          %v1406 = vld [vmem:[#allocation7 + $0x38] sm:$0xff]
          %v1407 = vld [vmem:[#allocation7 + $0x40] sm:$0xff]
          %v1408 = vld [vmem:[#allocation7 + $0x48] sm:$0xff]
          %v1409 = vld [vmem:[#allocation7 + $0x50] sm:$0xff]
          %v1410 = vld [vmem:[#allocation7 + $0x58] sm:$0xff]
          %v1411 = vld [vmem:[#allocation7 + $0x60] sm:$0xff]
          %v1412 = vld [vmem:[#allocation7 + $0x68] sm:$0xff]
          %v1413 = vld [vmem:[#allocation7 + $0x70] sm:$0xff]
          %v1414 = vld [vmem:[#allocation7 + $0x78] sm:$0xff]
          %v1415 = vmul.f32 %v1383, %v1399
          %v1416 = vmul.f32 %v1384, %v1400
          %v1417 = vmul.f32 %v1385, %v1401
          %v1418 = vmul.f32 %v1386, %v1402
          %v1419 = vmul.f32 %v1387, %v1403
          %v1420 = vmul.f32 %v1388, %v1404
          %v1421 = vmul.f32 %v1389, %v1405
          %v1422 = vmul.f32 %v1390, %v1406
          %v1423 = vmul.f32 %v1391, %v1407
          %v1424 = vmul.f32 %v1392, %v1408
          %v1425 = vmul.f32 %v1393, %v1409
          %v1426 = vmul.f32 %v1394, %v1410
          %v1427 = vmul.f32 %v1395, %v1411
          %v1428 = vmul.f32 %v1396, %v1412
          %v1429 = vmul.f32 %v1397, %v1413
          %v1430 = vmul.f32 %v1398, %v1414
          %1431 = vst [vmem:[%s265] sm:$0xff] %v1415
          %1432 = vst [vmem:[%s265 + $0x8] sm:$0xff] %v1416
          %1433 = vst [vmem:[%s265 + $0x10] sm:$0xff] %v1417
          %1434 = vst [vmem:[%s265 + $0x18] sm:$0xff] %v1418
          %1435 = vst [vmem:[%s265 + $0x20] sm:$0xff] %v1419
          %1436 = vst [vmem:[%s265 + $0x28] sm:$0xff] %v1420
          %1437 = vst [vmem:[%s265 + $0x30] sm:$0xff] %v1421
          %1438 = vst [vmem:[%s265 + $0x38] sm:$0xff] %v1422
          %1439 = vst [vmem:[%s265 + $0x40] sm:$0xff] %v1423
          %1440 = vst [vmem:[%s265 + $0x48] sm:$0xff] %v1424
          %1441 = vst [vmem:[%s265 + $0x50] sm:$0xff] %v1425
          %1442 = vst [vmem:[%s265 + $0x58] sm:$0xff] %v1426
          %1443 = vst [vmem:[%s265 + $0x60] sm:$0xff] %v1427
          %1444 = vst [vmem:[%s265 + $0x68] sm:$0xff] %v1428
          %1445 = vst [vmem:[%s265 + $0x70] sm:$0xff] %v1429
          %1446 = vst [vmem:[%s265 + $0x78] sm:$0xff] %v1430
          %v1447 = vld [vmem:[%s1153] sm:$0xff]
          %v1448 = vld [vmem:[%s1153 + $0x8] sm:$0xff]
          %v1449 = vld [vmem:[%s1153 + $0x10] sm:$0xff]
          %v1450 = vld [vmem:[%s1153 + $0x18] sm:$0xff]
          %v1451 = vld [vmem:[%s1153 + $0x20] sm:$0xff]
          %v1452 = vld [vmem:[%s1153 + $0x28] sm:$0xff]
          %v1453 = vld [vmem:[%s1153 + $0x30] sm:$0xff]
          %v1454 = vld [vmem:[%s1153 + $0x38] sm:$0xff]
          %v1455 = vld [vmem:[%s1153 + $0x40] sm:$0xff]
          %v1456 = vld [vmem:[%s1153 + $0x48] sm:$0xff]
          %v1457 = vld [vmem:[%s1153 + $0x50] sm:$0xff]
          %v1458 = vld [vmem:[%s1153 + $0x58] sm:$0xff]
          %v1459 = vld [vmem:[%s1153 + $0x60] sm:$0xff]
          %v1460 = vld [vmem:[%s1153 + $0x68] sm:$0xff]
          %v1461 = vld [vmem:[%s1153 + $0x70] sm:$0xff]
          %v1462 = vld [vmem:[%s1153 + $0x78] sm:$0xff]
          %v1463 = vld [vmem:[#allocation7] sm:$0xff]
          %v1464 = vld [vmem:[#allocation7 + $0x8] sm:$0xff]
          %v1465 = vld [vmem:[#allocation7 + $0x10] sm:$0xff]
          %v1466 = vld [vmem:[#allocation7 + $0x18] sm:$0xff]
          %v1467 = vld [vmem:[#allocation7 + $0x20] sm:$0xff]
          %v1468 = vld [vmem:[#allocation7 + $0x28] sm:$0xff]
          %v1469 = vld [vmem:[#allocation7 + $0x30] sm:$0xff]
          %v1470 = vld [vmem:[#allocation7 + $0x38] sm:$0xff]
          %v1471 = vld [vmem:[#allocation7 + $0x40] sm:$0xff]
          %v1472 = vld [vmem:[#allocation7 + $0x48] sm:$0xff]
          %v1473 = vld [vmem:[#allocation7 + $0x50] sm:$0xff]
          %v1474 = vld [vmem:[#allocation7 + $0x58] sm:$0xff]
          %v1475 = vld [vmem:[#allocation7 + $0x60] sm:$0xff]
          %v1476 = vld [vmem:[#allocation7 + $0x68] sm:$0xff]
          %v1477 = vld [vmem:[#allocation7 + $0x70] sm:$0xff]
          %v1478 = vld [vmem:[#allocation7 + $0x78] sm:$0xff]
          %v1479 = vmul.f32 %v1447, %v1463
          %v1480 = vmul.f32 %v1448, %v1464
          %v1481 = vmul.f32 %v1449, %v1465
          %v1482 = vmul.f32 %v1450, %v1466
          %v1483 = vmul.f32 %v1451, %v1467
          %v1484 = vmul.f32 %v1452, %v1468
          %v1485 = vmul.f32 %v1453, %v1469
          %v1486 = vmul.f32 %v1454, %v1470
          %v1487 = vmul.f32 %v1455, %v1471
          %v1488 = vmul.f32 %v1456, %v1472
          %v1489 = vmul.f32 %v1457, %v1473
          %v1490 = vmul.f32 %v1458, %v1474
          %v1491 = vmul.f32 %v1459, %v1475
          %v1492 = vmul.f32 %v1460, %v1476
          %v1493 = vmul.f32 %v1461, %v1477
          %v1494 = vmul.f32 %v1462, %v1478
          %1495 = vst [vmem:[%s1153] sm:$0xff] %v1479
          %1496 = vst [vmem:[%s1153 + $0x8] sm:$0xff] %v1480
          %1497 = vst [vmem:[%s1153 + $0x10] sm:$0xff] %v1481
          %1498 = vst [vmem:[%s1153 + $0x18] sm:$0xff] %v1482
          %1499 = vst [vmem:[%s1153 + $0x20] sm:$0xff] %v1483
          %1500 = vst [vmem:[%s1153 + $0x28] sm:$0xff] %v1484
          %1501 = vst [vmem:[%s1153 + $0x30] sm:$0xff] %v1485
          %1502 = vst [vmem:[%s1153 + $0x38] sm:$0xff] %v1486
          %1503 = vst [vmem:[%s1153 + $0x40] sm:$0xff] %v1487
          %1504 = vst [vmem:[%s1153 + $0x48] sm:$0xff] %v1488
          %1505 = vst [vmem:[%s1153 + $0x50] sm:$0xff] %v1489
          %1506 = vst [vmem:[%s1153 + $0x58] sm:$0xff] %v1490
          %1507 = vst [vmem:[%s1153 + $0x60] sm:$0xff] %v1491
          %1508 = vst [vmem:[%s1153 + $0x68] sm:$0xff] %v1492
          %1509 = vst [vmem:[%s1153 + $0x70] sm:$0xff] %v1493
          %1510 = vst [vmem:[%s1153 + $0x78] sm:$0xff] %v1494
        $region52: #{tpu_custom_call.1} parent=31 // pred_fallthru
          _
        %s1511 = sand.u32 %s116, 1
        %s1512 = scalar_lea.sflag [#allocation4], %s1511
        %s1513 = sand.u32 %s116, 1
        %s1514 = smul.addr %s1513, 256
        %s1515 = scalar_lea.vmem [#allocation8], %s1514
        %s1516 = sand.u32 %s142, 1
        %s1517 = scalar_lea.sflag [#allocation10], %s1516
        %s1518 = sand.u32 %s142, 1
        %s1519 = smul.addr %s1518, 2
        %s1520 = scalar_lea.vmem [#allocation9], %s1519
        // Predicated region
        $region53: #{tpu_custom_call.1} parent=31 // pred_check
          %p1521 = pneg %p126
        $region54: #{tpu_custom_call.1} parent=31 // pred_check_branch
          %1523 = sbr.rel (%p1521) target = $region56
        $region55: #{tpu_custom_call.1} parent=31 // pred_region
          %s1525 = ssub.s32 4096, 4096
          %1526 = vsyncadd %s1512, %s1525
          %s1527 = smul.addr %s30, 32
          %s1528 = smul.addr %s1527, 128
          %s1529 = scalar_lea.hbm %s3, %s1528
          %s1530 = sshll.u32 %s1515, 4
          %s1531 = int_to_ptr.vmem [resolvable:$true] %s1530
          %1536 = dma.vmem_to_hbm [thread:$0]  %s1531, 4096, %s1529, %s1512, 128, 128, 8
        $region56: #{tpu_custom_call.1} parent=31 // pred_fallthru
          _
        // Predicated region
        $region57: #{tpu_custom_call.1} parent=31 // pred_check
          %p1537 = pneg %p152
        $region58: #{tpu_custom_call.1} parent=31 // pred_check_branch
          %1539 = sbr.rel (%p1537) target = $region60
        $region59: #{tpu_custom_call.1} parent=31 // pred_region
          %s1541 = ssub.s32 32, 32
          %1542 = vsyncadd %s1517, %s1541
          %s1543 = smul.addr %s30, 2
          %s1544 = smul.addr %s1543, 16
          %s1545 = scalar_lea.hbm %s4, %s1544
          %s1547 = sshll.u32 %s1520, 4
          %s1548 = int_to_ptr.vmem [resolvable:$true] %s1547
          %1550 = dma.vmem_to_hbm [thread:$0]  %s1548, 32, %s1545, %s1517
        $region60: #{tpu_custom_call.1} parent=31 // pred_fallthru
          _
      $region32: #{tpu_custom_call.1} parent=5 // pred_fallthru
        _
      %p1551 = scmp.le.s32.totalorder 2, %s21
      // Predicated region
      $region61: #{tpu_custom_call.1} parent=5 // pred_check
        %p1552 = pneg %p1551
      $region62: #{tpu_custom_call.1} parent=5 // pred_check_branch
        %1554 = sbr.rel (%p1552) target = $region64
      $region63: #{tpu_custom_call.1} parent=5 // pred_region
        %s1555 = ssub.s32 %s21, 2
        // Predicated region
        $region65: #{tpu_custom_call.1} parent=63 // pred_check
          %p1556 = pneg %p132
        $region66: #{tpu_custom_call.1} parent=63 // pred_check_branch
          %1558 = sbr.rel (%p1556) target = $region68
        $region67: #{tpu_custom_call.1} parent=63 // pred_region
          %s1559 = sand.u32 %s117, 1
          %s1560 = scalar_lea.sflag [#allocation4], %s1559
          %s1561 = sand.u32 %s117, 1
          %s1562 = smul.addr %s1561, 256
          %s1563 = scalar_lea.vmem [#allocation8], %s1562
          %1564 = dma.done %s1560, 4096
        $region68: #{tpu_custom_call.1} parent=63 // pred_fallthru
          _
        // Predicated region
        $region69: #{tpu_custom_call.1} parent=63 // pred_check
          %p1565 = pneg %p158
        $region70: #{tpu_custom_call.1} parent=63 // pred_check_branch
          %1567 = sbr.rel (%p1565) target = $region72
        $region71: #{tpu_custom_call.1} parent=63 // pred_region
          %s1568 = sand.u32 %s143, 1
          %s1569 = scalar_lea.sflag [#allocation10], %s1568
          %s1570 = sand.u32 %s143, 1
          %s1571 = smul.addr %s1570, 2
          %s1572 = scalar_lea.vmem [#allocation9], %s1571
          %1573 = dma.done %s1569, 32
        $region72: #{tpu_custom_call.1} parent=63 // pred_fallthru
          _
      $region64: #{tpu_custom_call.1} parent=5 // pred_fallthru
        _
    $region6: #{tpu_custom_call.1} parent=1 // loop_footer
      %s25 = sadd.s32 1, %s21
    $region7: #{tpu_custom_call.1} parent=1 // loop_footer_branch
      %20 = sbr.rel target = $region3
    $region8: #{tpu_custom_call.1} parent=1 // loop_exit
      _
    %1574 = vsyncpa [#allocation3], 1
    %s1575 = scalar_lea.sflag [#allocation3], 1
    %1576 = vsyncpa %s1575, 1
    %1577 = vsyncpa [#allocation6], 1
    %1578 = vsyncpa [#allocation4], 1
    %s1579 = scalar_lea.sflag [#allocation4], 1
    %1580 = vsyncpa %s1579, 1
    %1581 = vsyncpa [#allocation10], 1
    %s1582 = scalar_lea.sflag [#allocation10], 1
    %1583 = vsyncpa %s1582, 1

</llo_original>
